<compile_context>
chip_gen: v5e
topology: v5e:2x2
jax: 0.10.0
libtpu: 0.0.40
codegen_flags: <defaults>
</compile_context>

<pallas_src>
import math

import jax
import jax.numpy as jnp
from jax.experimental import pallas as pl
from jax.experimental.pallas import tpu as pltpu

N_UNPITCHED_FEATURES = 2
N_UNPITCHED_NOTES = 47


def get_mean_size(*values, factor=1):
    mean = (sum(values) / len(values)) * factor
    return math.ceil(mean)


def make_params(key, rhythm_size, beat_size, bar_size):
    """Deterministic synthetic parameters with the same shapes as the nn.Module."""
    beats_ls = get_mean_size(beat_size, rhythm_size)
    bars_ls = get_mean_size(bar_size, rhythm_size, factor=0.5)
    chan_ls = get_mean_size(N_UNPITCHED_NOTES * N_UNPITCHED_FEATURES, rhythm_size,
                            factor=0.25)
    bpm_ls = get_mean_size(1, rhythm_size, factor=0.25)
    lin_in = beats_ls + bars_ls + chan_ls + bpm_ls

    dims = [
        (beats_ls, beat_size),
        (bars_ls, bar_size),
        (chan_ls, N_UNPITCHED_NOTES * N_UNPITCHED_FEATURES),
        (bpm_ls, 1),
        (rhythm_size, lin_in),
    ]
    keys = jax.random.split(key, 2 * len(dims))
    params = []
    for i, (out_f, in_f) in enumerate(dims):
        bound = 1.0 / math.sqrt(in_f)
        w = jax.random.uniform(keys[2 * i], (out_f, in_f), jnp.float32, -bound, bound)
        b = jax.random.uniform(keys[2 * i + 1], (out_f,), jnp.float32, -bound, bound)
        params.append((w, b))
    return params


def _leaky(x):
    return jnp.where(x > 0, x, 0.01 * x)


def _vmem_capacity_bytes():
    """Physical per-core VMEM; conservative 64 MiB (v7x) if the query fails."""
    try:
        info = pltpu.get_tpu_info()
        cap = getattr(info, "vmem_capacity_bytes", None)
        if cap:
            return int(cap)
    except Exception:
        pass
    return 64 * 1024 * 1024


def unpitched_rhythm_encoder_pallas(beats, bars, channels, bpm, params):
    (w1, b1), (w2, b2), (w3, b3), (w4, b4), (w5, b5) = params
    B, C, n_bars, n_beats = beats.shape[:4]
    n_sub = channels.shape[4]
    beat_size = beats.shape[-1]
    bar_size = bars.shape[-1]
    chan_feat = channels.shape[-2] * channels.shape[-1]
    rows = n_bars * n_beats * n_sub          # rows per (batch, channel)
    M = B * rows                             # rows per channel step
    R = w5.shape[0]
    ls1, ls2, ls3, ls4 = w1.shape[0], w2.shape[0], w3.shape[0], w4.shape[0]
    FB_in, FB_out = bar_size + 1, ls2 + ls4

    f32 = jnp.float32
    bf16 = jnp.bfloat16

    # ---- channels: FREE reshape view, native dtype/layout, no staging copy ----
    xch = channels.reshape(B, C, rows, chan_feat)

    # ---- beats: tiny per-channel staging (broadcast along n_sub), bf16 ----
    xbt = jnp.broadcast_to(beats.astype(bf16)[:, :, :, :, None, :],
                           (B, C, n_bars, n_beats, n_sub, beat_size))
    xbt = jnp.transpose(xbt, (1, 0, 2, 3, 4, 5)).reshape(C, M, beat_size)

    # ---- channel-invariant input: [bars | bpm] -> (M, FB_in), bf16, no C copy ----
    bars_b = jnp.broadcast_to(bars.astype(f32)[:, :, None, None, :],
                              (B, n_bars, n_beats, n_sub, bar_size))
    bpm_b = jnp.broadcast_to(bpm.astype(f32)[:, None, None, None, None],
                             (B, n_bars, n_beats, n_sub, 1))
    xbb = jnp.concatenate([bars_b, bpm_b], axis=-1).reshape(M, FB_in).astype(bf16)

    # ---- weights: per-branch first layer + row-split final linear ----
    w1t = jnp.asarray(w1, f32).T.astype(bf16)                 # (beat_size, ls1)
    w3t = jnp.asarray(w3, f32).T.astype(bf16)                 # (chan_feat, ls3)
    b1r = jnp.asarray(b1, f32)[None, :]
    b3r = jnp.asarray(b3, f32)[None, :]

    wB = jnp.zeros((FB_in, FB_out), f32)                      # block-diag [bars|bpm]
    wB = wB.at[:bar_size, :ls2].set(jnp.asarray(w2, f32).T)
    wB = wB.at[bar_size:, ls2:].set(jnp.asarray(w4, f32).T)
    wB = wB.astype(bf16)
    bBr = jnp.concatenate([b2, b4]).astype(f32)[None, :]

    w5t = jnp.asarray(w5, f32).T                              # (lin_in, R)
    w51 = w5t[:ls1].astype(bf16)                              # beats rows
    w53 = w5t[ls1 + ls2: ls1 + ls2 + ls3].astype(bf16)        # channel rows
    w5B = jnp.concatenate([w5t[ls1:ls1 + ls2],
                           w5t[ls1 + ls2 + ls3:]], axis=0).astype(bf16)  # bars|bpm
    b5r = jnp.asarray(b5, f32)[None, :]

    # ------------------------------ kernel ------------------------------
    def kernel(xch_ref, xbt_ref, xbb_ref,
               w1_ref, b1_ref, w3_ref, b3_ref, wB_ref, bB_ref,
               w51_ref, w53_ref, w5B_ref, b5_ref,
               out_ref, hB_ref, nsum_ref):
        c = pl.program_id(0)

        @pl.when(c == 0)
        def _init():
            # Channel-invariant branches (bars, bpm): computed once, kept
            # resident as a bf16 hidden state (cheaper than an f32 (M, R) slab).
            hB = _leaky(jnp.dot(xbb_ref[...], wB_ref[...],
                                preferred_element_type=jnp.float32) + bB_ref[...])
            hB_ref[...] = hB.astype(jnp.bfloat16)
            out_ref[...] = jnp.zeros_like(out_ref)
            nsum_ref[...] = jnp.zeros_like(nsum_ref)

        # Channel-varying first layer: two tiny-K matmuls (both pad to K=128).
        xch_bf = xch_ref[...].reshape(M, chan_feat).astype(jnp.bfloat16)
        h1 = _leaky(jnp.dot(xbt_ref[...], w1_ref[...],
                            preferred_element_type=jnp.float32) + b1_ref[...])
        h3 = _leaky(jnp.dot(xch_bf, w3_ref[...],
                            preferred_element_type=jnp.float32) + b3_ref[...])

        # Final linear assembled from three small MXU matmuls (HBM-bound kernel,
        # MXU has plenty of slack).
        y = (jnp.dot(h1.astype(jnp.bfloat16), w51_ref[...],
                     preferred_element_type=jnp.float32)
             + jnp.dot(h3.astype(jnp.bfloat16), w53_ref[...],
                       preferred_element_type=jnp.float32)
             + jnp.dot(hB_ref[...], w5B_ref[...],
                       preferred_element_type=jnp.float32)
             + b5_ref[...])
        y = _leaky(y)

        # combine(x, dim=1): per-channel norm = sqrt(1 + sum over rows/features).
        # Rows-first reduction (VPU adds), then one (1, R) lane reduce (XLU).
        col = jnp.sum(y * y, axis=0, keepdims=True)       # (1, R)
        sq = jnp.sum(col, axis=1, keepdims=True)          # (1, 1)
        norm_c = jnp.sqrt(1.0 + sq)

        out_ref[...] += y * norm_c          # weighted sum accumulates in the output
        nsum_ref[...] += norm_c

        @pl.when(c == pl.num_programs(0) - 1)
        def _finalize():
            out_ref[...] = out_ref[...] / nsum_ref[...]   # exact; runs once

    # ------------------------------ specs ------------------------------
    def const_spec(arr):
        nd = arr.ndim
        return pl.BlockSpec(arr.shape, lambda c, _nd=nd: (0,) * _nd)

    in_arrays = [xch, xbt, xbb, w1t, b1r, w3t, b3r, wB, bBr, w51, w53, w5B, b5r]
    in_specs = [
        pl.BlockSpec((B, None, rows, chan_feat), lambda c: (0, c, 0, 0)),
        pl.BlockSpec((None, M, beat_size), lambda c: (c, 0, 0)),
    ] + [const_spec(a) for a in in_arrays[2:]]

    # --------------------------- VMEM budget ---------------------------
    # Every (M, last_dim) buffer is padded to 128 lanes in VMEM; per-row bytes:
    def _lane_bytes(last_dim, itemsize):
        return ((last_dim + 127) // 128) * 128 * itemsize

    per_row = (
        2 * _lane_bytes(chan_feat, xch.dtype.itemsize)    # channels (2 pipeline bufs)
        + 2 * _lane_bytes(beat_size, 2)                   # beats bf16 (2 bufs)
        + 2 * _lane_bytes(FB_in, 2)                       # [bars|bpm] bf16 (2 bufs)
        + 2 * _lane_bytes(R, 4)                           # resident output f32 (2 bufs)
        + _lane_bytes(FB_out, 2)                          # hB scratch bf16
    )
    est = M * per_row + (2 << 20)                         # + weights / slack

    cap = _vmem_capacity_bytes()
    if cap <= 64 * 1024 * 1024:
        ceiling = 52 * 1024 * 1024                        # v7x: leave ~12 MiB headroom
    else:
        ceiling = min(cap - 24 * 1024 * 1024, 104 * 1024 * 1024)   # v5e / v6e
    vmem_limit = int(min(max(est, 32 * 1024 * 1024), ceiling))

    out = pl.pallas_call(
        kernel,
        out_shape=jax.ShapeDtypeStruct((M, R), jnp.float32),
        grid_spec=pltpu.PrefetchScalarGridSpec(
            num_scalar_prefetch=0,
            grid=(C,),
            in_specs=in_specs,
            out_specs=pl.BlockSpec((M, R), lambda c: (0, 0)),
            scratch_shapes=[pltpu.VMEM((M, FB_out), jnp.bfloat16),   # resident hB
                            pltpu.VMEM((1, 1), jnp.float32)],        # nsum
        ),
        compiler_params=pltpu.CompilerParams(
            dimension_semantics=("arbitrary",),   # C accumulates into resident out
            vmem_limit_bytes=vmem_limit,
        ),
    )(*in_arrays)

    return out.reshape(B, n_bars, n_beats, n_sub, R)


def reference_forward(beats, bars, channels, bpm, params):
    """Plain-JAX mirror of the PyTorch forward (for verification)."""
    (w1, b1), (w2, b2), (w3, b3), (w4, b4), (w5, b5) = params
    hi = jax.lax.Precision.HIGHEST

    def linear(x, w, b):
        return jnp.matmul(x, w.T, precision=hi) + b

    x1 = _leaky(linear(beats, w1, b1))[:, :, :, :, None, :]          # unsqueeze(4)
    x2 = _leaky(linear(bars, w2, b2))
    x2 = x2.reshape(x2.shape[0], 1, x2.shape[1], 1, 1, -1)
    ch = channels.reshape(channels.shape[:-2] + (-1,))                # squash_dims(-2)
    x3 = _leaky(linear(ch, w3, b3))
    x4 = _leaky(linear(bpm[:, None], w4, b4))
    x4 = x4.reshape(x4.shape[0], 1, 1, 1, 1, x4.shape[1])

    lead = jnp.broadcast_shapes(x1.shape[:-1], x2.shape[:-1],
                                x3.shape[:-1], x4.shape[:-1])
    parts = [jnp.broadcast_to(t, lead + (t.shape[-1],)) for t in (x1, x2, x3, x4)]
    x = jnp.concatenate(parts, axis=-1)                               # cat_with_broadcast
    x = _leaky(linear(x, w5, b5))

    # combine(x, dim=1), safe=True
    sq = jnp.sum(x * x, axis=(0, 2, 3, 4, 5), keepdims=True)
    norm = jnp.sqrt(1.0 + sq)
    return jnp.sum(x * norm, axis=1) / jnp.sum(norm)


if __name__ == "__main__":
    rhythm_size, beat_size, bar_size = 32, 8, 16
    B, C, n_bars, n_beats, n_sub = 2, 2, 2, 4, 3

    key = jax.random.PRNGKey(0)
    kp, k1, k2, k3, k4 = jax.random.split(key, 5)

    params = make_params(kp, rhythm_size, beat_size, bar_size)

    beats = jax.random.normal(k1, (B, C, n_bars, n_beats, beat_size), jnp.float32)
    bars = jax.random.normal(k2, (B, n_bars, bar_size), jnp.float32)
    channels = jax.random.normal(
        k3, (B, C, n_bars, n_beats, n_sub, N_UNPITCHED_NOTES, N_UNPITCHED_FEATURES),
        jnp.float32)
    bpm = jax.random.uniform(k4, (B,), jnp.float32, 0.5, 2.0)

    out = unpitched_rhythm_encoder_pallas(beats, bars, channels, bpm, params)
    out = jax.block_until_ready(out)

    ref = reference_forward(beats, bars, channels, bpm, params)
    assert out.shape == (B, n_bars, n_beats, n_sub, rhythm_size), out.shape
    max_err = float(jnp.max(jnp.abs(out - ref)))
    assert bool(jnp.allclose(out, ref, rtol=1e-2, atol=1e-2)), max_err

    print("KERNEL_OK")
</pallas_src>

<mosaic_0001>
module attributes {stable_mosaic.version = 11 : i64} {
  func.func @kernel(%arg0: i32, %arg1: memref<2x1x24x94xf32, #tpu.memory_space<vmem>>, %arg2: memref<1x48x8xbf16, #tpu.memory_space<vmem>>, %arg3: memref<48x17xbf16, #tpu.memory_space<vmem>>, %arg4: memref<8x20xbf16, #tpu.memory_space<vmem>>, %arg5: memref<1x20xf32, #tpu.memory_space<vmem>>, %arg6: memref<94x16xbf16, #tpu.memory_space<vmem>>, %arg7: memref<1x16xf32, #tpu.memory_space<vmem>>, %arg8: memref<17x17xbf16, #tpu.memory_space<vmem>>, %arg9: memref<1x17xf32, #tpu.memory_space<vmem>>, %arg10: memref<20x32xbf16, #tpu.memory_space<vmem>>, %arg11: memref<16x32xbf16, #tpu.memory_space<vmem>>, %arg12: memref<17x32xbf16, #tpu.memory_space<vmem>>, %arg13: memref<1x32xf32, #tpu.memory_space<vmem>>, %arg14: memref<48x32xf32, #tpu.memory_space<vmem>>, %arg15: memref<48x17xbf16, #tpu.memory_space<vmem>>, %arg16: memref<1x1xf32, #tpu.memory_space<vmem>>) attributes {dimension_semantics = [#tpu.dimension_semantics<arbitrary>], iteration_bounds = array<i64: 2>, scalar_prefetch = 0 : i64, scratch_operands = 2 : i64, tpu.core_type = #tpu.core_type<tc>, window_params = [{transform_indices = @transform_0, window_bounds = array<i64: 2, 1, 24, 94>}, {transform_indices = @transform_1, window_bounds = array<i64: 1, 48, 8>}, {pipeline_mode = #tpu.pipeline_mode<synchronous>, transform_indices = @transform_2, window_bounds = array<i64: 48, 17>}, {pipeline_mode = #tpu.pipeline_mode<synchronous>, transform_indices = @transform_3, window_bounds = array<i64: 8, 20>}, {pipeline_mode = #tpu.pipeline_mode<synchronous>, transform_indices = @transform_4, window_bounds = array<i64: 1, 20>}, {pipeline_mode = #tpu.pipeline_mode<synchronous>, transform_indices = @transform_5, window_bounds = array<i64: 94, 16>}, {pipeline_mode = #tpu.pipeline_mode<synchronous>, transform_indices = @transform_6, window_bounds = array<i64: 1, 16>}, {pipeline_mode = #tpu.pipeline_mode<synchronous>, transform_indices = @transform_7, window_bounds = array<i64: 17, 17>}, {pipeline_mode = #tpu.pipeline_mode<synchronous>, transform_indices = @transform_8, window_bounds = array<i64: 1, 17>}, {pipeline_mode = #tpu.pipeline_mode<synchronous>, transform_indices = @transform_9, window_bounds = array<i64: 20, 32>}, {pipeline_mode = #tpu.pipeline_mode<synchronous>, transform_indices = @transform_10, window_bounds = array<i64: 16, 32>}, {pipeline_mode = #tpu.pipeline_mode<synchronous>, transform_indices = @transform_11, window_bounds = array<i64: 17, 32>}, {pipeline_mode = #tpu.pipeline_mode<synchronous>, transform_indices = @transform_12, window_bounds = array<i64: 1, 32>}, {pipeline_mode = #tpu.pipeline_mode<synchronous>, transform_indices = @transform_13, window_bounds = array<i64: 48, 32>}]} {
    %c0_i32 = arith.constant 0 : i32
    %0 = arith.cmpi eq, %arg0, %c0_i32 : i32
    %1 = arith.extui %0 : i1 to i32
    %c0_i32_0 = arith.constant 0 : i32
    %2 = arith.cmpi ne, %1, %c0_i32_0 : i32
    scf.if %2 {
      %c0_47 = arith.constant 0 : index
      %c0_48 = arith.constant 0 : index
      %67 = vector.load %arg3[%c0_47, %c0_48] : memref<48x17xbf16, #tpu.memory_space<vmem>>, vector<48x17xbf16>
      %c0_49 = arith.constant 0 : index
      %c0_50 = arith.constant 0 : index
      %68 = vector.load %arg8[%c0_49, %c0_50] : memref<17x17xbf16, #tpu.memory_space<vmem>>, vector<17x17xbf16>
      %cst_51 = arith.constant dense<0.000000e+00> : vector<48x17xf32>
      %69 = tpu.matmul %67, %68, %cst_51 {dimension_numbers = #tpu.dot_dimension_numbers<[1], [0], [0], [1], [0, 0, 1, 1], [], []>} : vector<48x17xbf16>, vector<17x17xbf16>, vector<48x17xf32> -> vector<48x17xf32>
      %c0_52 = arith.constant 0 : index
      %c0_53 = arith.constant 0 : index
      %70 = vector.load %arg9[%c0_52, %c0_53] : memref<1x17xf32, #tpu.memory_space<vmem>>, vector<1x17xf32>
      %71 = vector.broadcast %70 : vector<1x17xf32> to vector<48x17xf32>
      %72 = arith.addf %69, %71 : vector<48x17xf32>
      %cst_54 = arith.constant 0.000000e+00 : f32
      %73 = vector.broadcast %cst_54 : f32 to vector<48x17xf32>
      %74 = arith.cmpf ogt, %72, %73 : vector<48x17xf32>
      %cst_55 = arith.constant 0.00999999977 : f32
      %75 = vector.broadcast %cst_55 : f32 to vector<48x17xf32>
      %76 = arith.mulf %75, %72 : vector<48x17xf32>
      %77 = arith.select %74, %72, %76 : vector<48x17xi1>, vector<48x17xf32>
      %78 = arith.truncf %77 : vector<48x17xf32> to vector<48x17xbf16>
      %c0_56 = arith.constant 0 : index
      %c0_57 = arith.constant 0 : index
      %79 = vector.load %arg15[%c0_56, %c0_57] : memref<48x17xbf16, #tpu.memory_space<vmem>>, vector<48x17xbf16>
      tpu.vector_store %arg15[%c0_56, %c0_57], %78 {strides = array<i32>} : memref<48x17xbf16, #tpu.memory_space<vmem>>, vector<48x17xbf16>,
      %cst_58 = arith.constant 0.000000e+00 : f32
      %80 = vector.broadcast %cst_58 : f32 to vector<48x32xf32>
      %c0_59 = arith.constant 0 : index
      %c0_60 = arith.constant 0 : index
      %81 = vector.load %arg14[%c0_59, %c0_60] : memref<48x32xf32, #tpu.memory_space<vmem>>, vector<48x32xf32>
      tpu.vector_store %arg14[%c0_59, %c0_60], %80 {strides = array<i32>} : memref<48x32xf32, #tpu.memory_space<vmem>>, vector<48x32xf32>,
      %cst_61 = arith.constant 0.000000e+00 : f32
      %82 = vector.broadcast %cst_61 : f32 to vector<1x1xf32>
      %c0_62 = arith.constant 0 : index
      %c0_63 = arith.constant 0 : index
      %83 = vector.load %arg16[%c0_62, %c0_63] : memref<1x1xf32, #tpu.memory_space<vmem>>, vector<1x1xf32>
      tpu.vector_store %arg16[%c0_62, %c0_63], %82 {strides = array<i32>} : memref<1x1xf32, #tpu.memory_space<vmem>>, vector<1x1xf32>,
    } else {
    }
    %c0 = arith.constant 0 : index
    %c0_1 = arith.constant 0 : index
    %c0_2 = arith.constant 0 : index
    %c0_3 = arith.constant 0 : index
    %3 = vector.load %arg1[%c0, %c0_1, %c0_2, %c0_3] : memref<2x1x24x94xf32, #tpu.memory_space<vmem>>, vector<2x1x24x94xf32>
    %4 = vector.shape_cast %3 : vector<2x1x24x94xf32> to vector<2x24x94xf32>
    %5 = vector.shape_cast %4 : vector<2x24x94xf32> to vector<48x94xf32>
    %6 = arith.truncf %5 : vector<48x94xf32> to vector<48x94xbf16>
    %c0_4 = arith.constant 0 : index
    %c0_5 = arith.constant 0 : index
    %c0_6 = arith.constant 0 : index
    %7 = vector.load %arg2[%c0_4, %c0_5, %c0_6] : memref<1x48x8xbf16, #tpu.memory_space<vmem>>, vector<1x48x8xbf16>
    %8 = vector.shape_cast %7 : vector<1x48x8xbf16> to vector<48x8xbf16>
    %c0_7 = arith.constant 0 : index
    %c0_8 = arith.constant 0 : index
    %9 = vector.load %arg4[%c0_7, %c0_8] : memref<8x20xbf16, #tpu.memory_space<vmem>>, vector<8x20xbf16>
    %cst = arith.constant dense<0.000000e+00> : vector<48x20xf32>
    %10 = tpu.matmul %8, %9, %cst {dimension_numbers = #tpu.dot_dimension_numbers<[1], [0], [0], [1], [0, 0, 1, 1], [], []>} : vector<48x8xbf16>, vector<8x20xbf16>, vector<48x20xf32> -> vector<48x20xf32>
    %c0_9 = arith.constant 0 : index
    %c0_10 = arith.constant 0 : index
    %11 = vector.load %arg5[%c0_9, %c0_10] : memref<1x20xf32, #tpu.memory_space<vmem>>, vector<1x20xf32>
    %12 = vector.broadcast %11 : vector<1x20xf32> to vector<48x20xf32>
    %13 = arith.addf %10, %12 : vector<48x20xf32>
    %cst_11 = arith.constant 0.000000e+00 : f32
    %14 = vector.broadcast %cst_11 : f32 to vector<48x20xf32>
    %15 = arith.cmpf ogt, %13, %14 : vector<48x20xf32>
    %cst_12 = arith.constant 0.00999999977 : f32
    %16 = vector.broadcast %cst_12 : f32 to vector<48x20xf32>
    %17 = arith.mulf %16, %13 : vector<48x20xf32>
    %18 = arith.select %15, %13, %17 : vector<48x20xi1>, vector<48x20xf32>
    %c0_13 = arith.constant 0 : index
    %c0_14 = arith.constant 0 : index
    %19 = vector.load %arg6[%c0_13, %c0_14] : memref<94x16xbf16, #tpu.memory_space<vmem>>, vector<94x16xbf16>
    %cst_15 = arith.constant dense<0.000000e+00> : vector<48x16xf32>
    %20 = tpu.matmul %6, %19, %cst_15 {dimension_numbers = #tpu.dot_dimension_numbers<[1], [0], [0], [1], [0, 0, 1, 1], [], []>} : vector<48x94xbf16>, vector<94x16xbf16>, vector<48x16xf32> -> vector<48x16xf32>
    %c0_16 = arith.constant 0 : index
    %c0_17 = arith.constant 0 : index
    %21 = vector.load %arg7[%c0_16, %c0_17] : memref<1x16xf32, #tpu.memory_space<vmem>>, vector<1x16xf32>
    %22 = vector.broadcast %21 : vector<1x16xf32> to vector<48x16xf32>
    %23 = arith.addf %20, %22 : vector<48x16xf32>
    %cst_18 = arith.constant 0.000000e+00 : f32
    %24 = vector.broadcast %cst_18 : f32 to vector<48x16xf32>
    %25 = arith.cmpf ogt, %23, %24 : vector<48x16xf32>
    %cst_19 = arith.constant 0.00999999977 : f32
    %26 = vector.broadcast %cst_19 : f32 to vector<48x16xf32>
    %27 = arith.mulf %26, %23 : vector<48x16xf32>
    %28 = arith.select %25, %23, %27 : vector<48x16xi1>, vector<48x16xf32>
    %29 = arith.truncf %18 : vector<48x20xf32> to vector<48x20xbf16>
    %c0_20 = arith.constant 0 : index
    %c0_21 = arith.constant 0 : index
    %30 = vector.load %arg10[%c0_20, %c0_21] : memref<20x32xbf16, #tpu.memory_space<vmem>>, vector<20x32xbf16>
    %cst_22 = arith.constant dense<0.000000e+00> : vector<48x32xf32>
    %31 = tpu.matmul %29, %30, %cst_22 {dimension_numbers = #tpu.dot_dimension_numbers<[1], [0], [0], [1], [0, 0, 1, 1], [], []>} : vector<48x20xbf16>, vector<20x32xbf16>, vector<48x32xf32> -> vector<48x32xf32>
    %32 = arith.truncf %28 : vector<48x16xf32> to vector<48x16xbf16>
    %c0_23 = arith.constant 0 : index
    %c0_24 = arith.constant 0 : index
    %33 = vector.load %arg11[%c0_23, %c0_24] : memref<16x32xbf16, #tpu.memory_space<vmem>>, vector<16x32xbf16>
    %cst_25 = arith.constant dense<0.000000e+00> : vector<48x32xf32>
    %34 = tpu.matmul %32, %33, %cst_25 {dimension_numbers = #tpu.dot_dimension_numbers<[1], [0], [0], [1], [0, 0, 1, 1], [], []>} : vector<48x16xbf16>, vector<16x32xbf16>, vector<48x32xf32> -> vector<48x32xf32>
    %35 = arith.addf %31, %34 : vector<48x32xf32>
    %c0_26 = arith.constant 0 : index
    %c0_27 = arith.constant 0 : index
    %36 = vector.load %arg15[%c0_26, %c0_27] : memref<48x17xbf16, #tpu.memory_space<vmem>>, vector<48x17xbf16>
    %c0_28 = arith.constant 0 : index
    %c0_29 = arith.constant 0 : index
    %37 = vector.load %arg12[%c0_28, %c0_29] : memref<17x32xbf16, #tpu.memory_space<vmem>>, vector<17x32xbf16>
    %cst_30 = arith.constant dense<0.000000e+00> : vector<48x32xf32>
    %38 = tpu.matmul %36, %37, %cst_30 {dimension_numbers = #tpu.dot_dimension_numbers<[1], [0], [0], [1], [0, 0, 1, 1], [], []>} : vector<48x17xbf16>, vector<17x32xbf16>, vector<48x32xf32> -> vector<48x32xf32>
    %39 = arith.addf %35, %38 : vector<48x32xf32>
    %c0_31 = arith.constant 0 : index
    %c0_32 = arith.constant 0 : index
    %40 = vector.load %arg13[%c0_31, %c0_32] : memref<1x32xf32, #tpu.memory_space<vmem>>, vector<1x32xf32>
    %41 = vector.broadcast %40 : vector<1x32xf32> to vector<48x32xf32>
    %42 = arith.addf %39, %41 : vector<48x32xf32>
    %cst_33 = arith.constant 0.000000e+00 : f32
    %43 = vector.broadcast %cst_33 : f32 to vector<48x32xf32>
    %44 = arith.cmpf ogt, %42, %43 : vector<48x32xf32>
    %cst_34 = arith.constant 0.00999999977 : f32
    %45 = vector.broadcast %cst_34 : f32 to vector<48x32xf32>
    %46 = arith.mulf %45, %42 : vector<48x32xf32>
    %47 = arith.select %44, %42, %46 : vector<48x32xi1>, vector<48x32xf32>
    %48 = arith.mulf %47, %47 : vector<48x32xf32>
    %cst_35 = arith.constant dense<0.000000e+00> : vector<32xf32>
    %49 = vector.multi_reduction <add>, %48, %cst_35 [0] : vector<48x32xf32> to vector<32xf32>
    %50 = vector.shape_cast %49 : vector<32xf32> to vector<1x32xf32>
    %cst_36 = arith.constant dense<0.000000e+00> : vector<1xf32>
    %51 = vector.multi_reduction <add>, %50, %cst_36 [1] : vector<1x32xf32> to vector<1xf32>
    %52 = vector.shape_cast %51 : vector<1xf32> to vector<1x1xf32>
    %cst_37 = arith.constant 1.000000e+00 : f32
    %53 = vector.broadcast %cst_37 : f32 to vector<1x1xf32>
    %54 = arith.addf %53, %52 : vector<1x1xf32>
    %55 = math.sqrt %54 : vector<1x1xf32>
    %c0_38 = arith.constant 0 : index
    %c0_39 = arith.constant 0 : index
    %56 = vector.load %arg14[%c0_38, %c0_39] : memref<48x32xf32, #tpu.memory_space<vmem>>, vector<48x32xf32>
    %57 = vector.broadcast %55 : vector<1x1xf32> to vector<48x32xf32>
    %58 = arith.mulf %47, %57 : vector<48x32xf32>
    %59 = arith.addf %56, %58 : vector<48x32xf32>
    %c0_40 = arith.constant 0 : index
    %c0_41 = arith.constant 0 : index
    %60 = vector.load %arg14[%c0_40, %c0_41] : memref<48x32xf32, #tpu.memory_space<vmem>>, vector<48x32xf32>
    tpu.vector_store %arg14[%c0_40, %c0_41], %59 {strides = array<i32>} : memref<48x32xf32, #tpu.memory_space<vmem>>, vector<48x32xf32>,
    %c0_42 = arith.constant 0 : index
    %c0_43 = arith.constant 0 : index
    %61 = vector.load %arg16[%c0_42, %c0_43] : memref<1x1xf32, #tpu.memory_space<vmem>>, vector<1x1xf32>
    %62 = arith.addf %61, %55 : vector<1x1xf32>
    %c0_44 = arith.constant 0 : index
    %c0_45 = arith.constant 0 : index
    %63 = vector.load %arg16[%c0_44, %c0_45] : memref<1x1xf32, #tpu.memory_space<vmem>>, vector<1x1xf32>
    tpu.vector_store %arg16[%c0_44, %c0_45], %62 {strides = array<i32>} : memref<1x1xf32, #tpu.memory_space<vmem>>, vector<1x1xf32>,
    %c1_i32 = arith.constant 1 : i32
    %64 = arith.cmpi eq, %arg0, %c1_i32 : i32
    %65 = arith.extui %64 : i1 to i32
    %c0_i32_46 = arith.constant 0 : i32
    %66 = arith.cmpi ne, %65, %c0_i32_46 : i32
    scf.if %66 {
      %c0_47 = arith.constant 0 : index
      %c0_48 = arith.constant 0 : index
      %67 = vector.load %arg14[%c0_47, %c0_48] : memref<48x32xf32, #tpu.memory_space<vmem>>, vector<48x32xf32>
      %c0_49 = arith.constant 0 : index
      %c0_50 = arith.constant 0 : index
      %68 = vector.load %arg16[%c0_49, %c0_50] : memref<1x1xf32, #tpu.memory_space<vmem>>, vector<1x1xf32>
      %69 = vector.broadcast %68 : vector<1x1xf32> to vector<48x32xf32>
      %70 = arith.divf %67, %69 : vector<48x32xf32>
      %c0_51 = arith.constant 0 : index
      %c0_52 = arith.constant 0 : index
      %71 = vector.load %arg14[%c0_51, %c0_52] : memref<48x32xf32, #tpu.memory_space<vmem>>, vector<48x32xf32>
      tpu.vector_store %arg14[%c0_51, %c0_52], %70 {strides = array<i32>} : memref<48x32xf32, #tpu.memory_space<vmem>>, vector<48x32xf32>,
    } else {
    }
    return
  }
  func.func @transform_0(%arg0: i32) -> (i32, i32, i32, i32) {
    %c0_i32 = arith.constant 0 : i32
    %c0_i32_0 = arith.constant 0 : i32
    %c0_i32_1 = arith.constant 0 : i32
    %c0_i32_2 = arith.constant 0 : i32
    return %c0_i32, %arg0, %c0_i32_0, %c0_i32_1 : i32, i32, i32, i32
  }
  func.func @transform_1(%arg0: i32) -> (i32, i32, i32) {
    %c0_i32 = arith.constant 0 : i32
    %c0_i32_0 = arith.constant 0 : i32
    %c0_i32_1 = arith.constant 0 : i32
    return %arg0, %c0_i32, %c0_i32_0 : i32, i32, i32
  }
  func.func @transform_2(%arg0: i32) -> (i32, i32) {
    %c0_i32 = arith.constant 0 : i32
    %c0_i32_0 = arith.constant 0 : i32
    %c0_i32_1 = arith.constant 0 : i32
    return %c0_i32, %c0_i32_0 : i32, i32
  }
  func.func @transform_3(%arg0: i32) -> (i32, i32) {
    %c0_i32 = arith.constant 0 : i32
    %c0_i32_0 = arith.constant 0 : i32
    %c0_i32_1 = arith.constant 0 : i32
    return %c0_i32, %c0_i32_0 : i32, i32
  }
  func.func @transform_4(%arg0: i32) -> (i32, i32) {
    %c0_i32 = arith.constant 0 : i32
    %c0_i32_0 = arith.constant 0 : i32
    %c0_i32_1 = arith.constant 0 : i32
    return %c0_i32, %c0_i32_0 : i32, i32
  }
  func.func @transform_5(%arg0: i32) -> (i32, i32) {
    %c0_i32 = arith.constant 0 : i32
    %c0_i32_0 = arith.constant 0 : i32
    %c0_i32_1 = arith.constant 0 : i32
    return %c0_i32, %c0_i32_0 : i32, i32
  }
  func.func @transform_6(%arg0: i32) -> (i32, i32) {
    %c0_i32 = arith.constant 0 : i32
    %c0_i32_0 = arith.constant 0 : i32
    %c0_i32_1 = arith.constant 0 : i32
    return %c0_i32, %c0_i32_0 : i32, i32
  }
  func.func @transform_7(%arg0: i32) -> (i32, i32) {
    %c0_i32 = arith.constant 0 : i32
    %c0_i32_0 = arith.constant 0 : i32
    %c0_i32_1 = arith.constant 0 : i32
    return %c0_i32, %c0_i32_0 : i32, i32
  }
  func.func @transform_8(%arg0: i32) -> (i32, i32) {
    %c0_i32 = arith.constant 0 : i32
    %c0_i32_0 = arith.constant 0 : i32
    %c0_i32_1 = arith.constant 0 : i32
    return %c0_i32, %c0_i32_0 : i32, i32
  }
  func.func @transform_9(%arg0: i32) -> (i32, i32) {
    %c0_i32 = arith.constant 0 : i32
    %c0_i32_0 = arith.constant 0 : i32
    %c0_i32_1 = arith.constant 0 : i32
    return %c0_i32, %c0_i32_0 : i32, i32
  }
  func.func @transform_10(%arg0: i32) -> (i32, i32) {
    %c0_i32 = arith.constant 0 : i32
    %c0_i32_0 = arith.constant 0 : i32
    %c0_i32_1 = arith.constant 0 : i32
    return %c0_i32, %c0_i32_0 : i32, i32
  }
  func.func @transform_11(%arg0: i32) -> (i32, i32) {
    %c0_i32 = arith.constant 0 : i32
    %c0_i32_0 = arith.constant 0 : i32
    %c0_i32_1 = arith.constant 0 : i32
    return %c0_i32, %c0_i32_0 : i32, i32
  }
  func.func @transform_12(%arg0: i32) -> (i32, i32) {
    %c0_i32 = arith.constant 0 : i32
    %c0_i32_0 = arith.constant 0 : i32
    %c0_i32_1 = arith.constant 0 : i32
    return %c0_i32, %c0_i32_0 : i32, i32
  }
  func.func @transform_13(%arg0: i32) -> (i32, i32) {
    %c0_i32 = arith.constant 0 : i32
    %c0_i32_0 = arith.constant 0 : i32
    %c0_i32_1 = arith.constant 0 : i32
    return %c0_i32, %c0_i32_0 : i32, i32
  }
}

</mosaic_0001>

<llo_original>
// kernel: tpu_custom_call.1
$region0: #{tpu_custom_call.1}
  #allocation0 [shape = 'u32[]', space=smem, size = 0x4, offset = 0x4, fixed_abs, tag = 'smem constant byte address 0x4 - core index']
  #allocation1 [shape = 'u32[72,128]{1,0:T(1,128)}', space=vmem, size = 0x9000, scoped, tag = 'internal scratch']
  #allocation2 [shape = 'bf16[48,17]{1,0:T(8,128)(2,1)}', space=vmem, size = 0x3000, scoped, tag = 'scratch operand']
  #allocation3 [shape = 'f32[1,1]{1,0:T(1,128)}', space=vmem, size = 0x200, scoped, tag = 'scratch operand']
  %s0 = inlined_call_operand.vmem [shape: f32[2,2,24,94], index: 0, kind: input, shape index: {}]
  %s1 = inlined_call_operand.vmem [shape: bf16[2,48,8], index: 1, kind: input, shape index: {}]
  %s2 = inlined_call_operand.vmem [shape: bf16[48,17], index: 2, kind: input, shape index: {}]
  %s3 = inlined_call_operand.hbm [shape: bf16[8,20], index: 3, kind: input, shape index: {}]
  %s4 = inlined_call_operand.vmem [shape: f32[1,20], index: 4, kind: input, shape index: {}]
  %s5 = inlined_call_operand.vmem [shape: bf16[94,16], index: 5, kind: input, shape index: {}]
  %s6 = inlined_call_operand.hbm [shape: f32[1,16], index: 6, kind: input, shape index: {}]
  %s7 = inlined_call_operand.vmem [shape: bf16[17,17], index: 7, kind: input, shape index: {}]
  %s8 = inlined_call_operand.hbm [shape: f32[1,17], index: 8, kind: input, shape index: {}]
  %s9 = inlined_call_operand.vmem [shape: bf16[20,32], index: 9, kind: input, shape index: {}]
  %s10 = inlined_call_operand.vmem [shape: bf16[16,32], index: 10, kind: input, shape index: {}]
  %s11 = inlined_call_operand.vmem [shape: bf16[17,32], index: 11, kind: input, shape index: {}]
  %s12 = inlined_call_operand.vmem [shape: f32[1,32], index: 12, kind: input, shape index: {}]
  %s13 = inlined_call_operand.vmem [shape: f32[48,32], index: 13, kind: output, shape index: {}]
  %s14 = sld [smem:[#allocation0]]
  $region143: #{tpu_custom_call.1} parent=0
    _
  %s16 = ssub.s32 1, %s14
  %s17 = scalar_select 0, %s16, %s14
  $region1: #{tpu_custom_call.1} parent=0
    #allocation4 [shape = 'u8[49152]{0}', space=vmem, size = 0xc000, scoped, tag = 'input window, operand 0']
    #allocation5 [shape = 'u8[2048]{0}', space=vmem, size = 0x800, scoped, tag = 'input window, operand 3, single buffered']
    #allocation6 [shape = 's32[2]{0}', space=sflag, size = 0x8, scoped, tag = 'scoped memory for tpu_custom_call.1']
    #allocation7 [shape = 'u8[512]{0}', space=vmem, size = 0x400, scoped, tag = 'input window, operand 6, single buffered']
    #allocation8 [shape = 's32[1]{0}', space=sflag, size = 0x4, scoped, tag = 'scoped memory for tpu_custom_call.1']
    #allocation9 [shape = 'u8[512]{0}', space=vmem, size = 0x400, scoped, tag = 'input window, operand 8, single buffered']
    %18 = vsyncpa [#allocation6], 0
    %19 = vsyncpa [#allocation8], 0
    loop: start=0, step=1, limit=4
    $region2: #{tpu_custom_call.1} parent=1 // loop_pre_header
      _
    $region3: #{tpu_custom_call.1} parent=1 // loop_header
      %s21 = sphi 0, %s25
      %p22 = scmp.ge.s32.totalorder %s21, 4
      %s31 = sphi 0, %s33
      %s34 = sphi 0, %s31
      %s35 = sphi 0, %s34
      %s51 = sphi 0, %s35
      %s57 = sphi 0, %s59
      %s60 = sphi 0, %s57
      %s61 = sphi 0, %s60
      %s77 = sphi 0, %s61
      %s81 = sphi 0, %s81
      %s83 = sphi 0, %s81
      %s84 = sphi 0, %s83
      %s98 = sphi 0, %s84
      %s102 = sphi 0, %s102
      %s104 = sphi 0, %s102
      %s105 = sphi 0, %s104
      %s119 = sphi 0, %s105
      %s123 = sphi 0, %s123
      %s125 = sphi 0, %s123
      %s126 = sphi 0, %s125
      %s140 = sphi 0, %s126
      %s144 = sphi 0, %s144
      %s146 = sphi 0, %s144
      %s147 = sphi 0, %s146
      %s161 = sphi 0, %s147
      %s165 = sphi 0, %s165
      %s167 = sphi 0, %s165
      %s168 = sphi 0, %s167
      %s182 = sphi 0, %s168
      %s186 = sphi 0, %s186
      %s188 = sphi 0, %s186
      %s189 = sphi 0, %s188
      %s203 = sphi 0, %s189
      %s207 = sphi 0, %s207
      %s209 = sphi 0, %s207
      %s210 = sphi 0, %s209
      %s224 = sphi 0, %s210
      %s228 = sphi 0, %s228
      %s230 = sphi 0, %s228
      %s231 = sphi 0, %s230
      %s245 = sphi 0, %s231
      %s249 = sphi 0, %s249
      %s251 = sphi 0, %s249
      %s252 = sphi 0, %s251
      %s266 = sphi 0, %s252
      %s270 = sphi 0, %s270
      %s272 = sphi 0, %s270
      %s273 = sphi 0, %s272
      %s287 = sphi 0, %s273
      %s291 = sphi 0, %s291
      %s293 = sphi 0, %s291
      %s294 = sphi 0, %s293
      %s308 = sphi 0, %s294
      %s312 = sphi 0, %s312
      %s314 = sphi 0, %s312
      %s315 = sphi 0, %s314
      %s329 = sphi 0, %s315
    $region4: #{tpu_custom_call.1} parent=1 // loop_header_branch
      %24 = sbr.rel (%p22) target = $region8
    $region5: #{tpu_custom_call.1} parent=1 // loop_body
      %s26 = ssub.s32 %s21, 1
      %s27 = ssub.s32 %s21, 2
      %s28 = sadd.s32 %s21, 1
      %s29 = ssub.s32 %s21, %s28
      %p30 = scmp.eq.s32.totalorder %s29, 0
      %s32 = sadd.s32 %s31, 1
      %s33 = scalar_select %p30, %s31, %s32
      %p36 = pneg %p30
      %p37 = scmp.eq.s32.totalorder %s21, 1
      %p38 = por %p36, %p37
      %p39 = scmp.ne.s32.totalorder %s31, %s34
      %p40 = scmp.eq.s32.totalorder %s21, 0
      %p41 = por %p39, %p40
      %p42 = scmp.ne.s32.totalorder %s31, %s34
      %p43 = scmp.eq.s32.totalorder %s26, 1
      %p44 = por %p42, %p43
      %p45 = scmp.ne.s32.totalorder %s34, %s35
      %p46 = scmp.eq.s32.totalorder %s26, 0
      %p47 = por %p45, %p46
      %p48 = scmp.ne.s32.totalorder %s34, %s35
      %p49 = scmp.eq.s32.totalorder %s27, 1
      %p50 = por %p48, %p49
      %p52 = scmp.ne.s32.totalorder %s35, %s51
      %p53 = scmp.eq.s32.totalorder %s27, 0
      %p54 = por %p52, %p53
      %s55 = ssub.s32 %s21, %s28
      %p56 = scmp.eq.s32.totalorder %s55, 0
      %s58 = sadd.s32 %s57, 1
      %s59 = scalar_select %p56, %s57, %s58
      %p62 = pneg %p56
      %p63 = scmp.eq.s32.totalorder %s21, 1
      %p64 = por %p62, %p63
      %p65 = scmp.ne.s32.totalorder %s57, %s60
      %p66 = scmp.eq.s32.totalorder %s21, 0
      %p67 = por %p65, %p66
      %p68 = scmp.ne.s32.totalorder %s57, %s60
      %p69 = scmp.eq.s32.totalorder %s26, 1
      %p70 = por %p68, %p69
      %p71 = scmp.ne.s32.totalorder %s60, %s61
      %p72 = scmp.eq.s32.totalorder %s26, 0
      %p73 = por %p71, %p72
      %p74 = scmp.ne.s32.totalorder %s60, %s61
      %p75 = scmp.eq.s32.totalorder %s27, 1
      %p76 = por %p74, %p75
      %p78 = scmp.ne.s32.totalorder %s61, %s77
      %p79 = scmp.eq.s32.totalorder %s27, 0
      %p80 = por %p78, %p79
      %s82 = sadd.s32 %s81, 1
      %p85 = scmp.eq.s32.totalorder %s21, 1
      %p86 = scmp.ne.s32.totalorder %s81, %s83
      %p87 = scmp.eq.s32.totalorder %s21, 0
      %p88 = por %p86, %p87
      %p89 = scmp.ne.s32.totalorder %s81, %s83
      %p90 = scmp.eq.s32.totalorder %s26, 1
      %p91 = por %p89, %p90
      %p92 = scmp.ne.s32.totalorder %s83, %s84
      %p93 = scmp.eq.s32.totalorder %s26, 0
      %p94 = por %p92, %p93
      %p95 = scmp.ne.s32.totalorder %s83, %s84
      %p96 = scmp.eq.s32.totalorder %s27, 1
      %p97 = por %p95, %p96
      %p99 = scmp.ne.s32.totalorder %s84, %s98
      %p100 = scmp.eq.s32.totalorder %s27, 0
      %p101 = por %p99, %p100
      %s103 = sadd.s32 %s102, 1
      %p106 = scmp.eq.s32.totalorder %s21, 1
      %p107 = scmp.ne.s32.totalorder %s102, %s104
      %p108 = scmp.eq.s32.totalorder %s21, 0
      %p109 = por %p107, %p108
      %p110 = scmp.ne.s32.totalorder %s102, %s104
      %p111 = scmp.eq.s32.totalorder %s26, 1
      %p112 = por %p110, %p111
      %p113 = scmp.ne.s32.totalorder %s104, %s105
      %p114 = scmp.eq.s32.totalorder %s26, 0
      %p115 = por %p113, %p114
      %p116 = scmp.ne.s32.totalorder %s104, %s105
      %p117 = scmp.eq.s32.totalorder %s27, 1
      %p118 = por %p116, %p117
      %p120 = scmp.ne.s32.totalorder %s105, %s119
      %p121 = scmp.eq.s32.totalorder %s27, 0
      %p122 = por %p120, %p121
      %s124 = sadd.s32 %s123, 1
      %p127 = scmp.eq.s32.totalorder %s21, 1
      %p128 = scmp.ne.s32.totalorder %s123, %s125
      %p129 = scmp.eq.s32.totalorder %s21, 0
      %p130 = por %p128, %p129
      %p131 = scmp.ne.s32.totalorder %s123, %s125
      %p132 = scmp.eq.s32.totalorder %s26, 1
      %p133 = por %p131, %p132
      %p134 = scmp.ne.s32.totalorder %s125, %s126
      %p135 = scmp.eq.s32.totalorder %s26, 0
      %p136 = por %p134, %p135
      %p137 = scmp.ne.s32.totalorder %s125, %s126
      %p138 = scmp.eq.s32.totalorder %s27, 1
      %p139 = por %p137, %p138
      %p141 = scmp.ne.s32.totalorder %s126, %s140
      %p142 = scmp.eq.s32.totalorder %s27, 0
      %p143 = por %p141, %p142
      %s145 = sadd.s32 %s144, 1
      %p148 = scmp.eq.s32.totalorder %s21, 1
      %p149 = scmp.ne.s32.totalorder %s144, %s146
      %p150 = scmp.eq.s32.totalorder %s21, 0
      %p151 = por %p149, %p150
      %p152 = scmp.ne.s32.totalorder %s144, %s146
      %p153 = scmp.eq.s32.totalorder %s26, 1
      %p154 = por %p152, %p153
      %p155 = scmp.ne.s32.totalorder %s146, %s147
      %p156 = scmp.eq.s32.totalorder %s26, 0
      %p157 = por %p155, %p156
      %p158 = scmp.ne.s32.totalorder %s146, %s147
      %p159 = scmp.eq.s32.totalorder %s27, 1
      %p160 = por %p158, %p159
      %p162 = scmp.ne.s32.totalorder %s147, %s161
      %p163 = scmp.eq.s32.totalorder %s27, 0
      %p164 = por %p162, %p163
      %s166 = sadd.s32 %s165, 1
      %p169 = scmp.eq.s32.totalorder %s21, 1
      %p170 = scmp.ne.s32.totalorder %s165, %s167
      %p171 = scmp.eq.s32.totalorder %s21, 0
      %p172 = por %p170, %p171
      %p173 = scmp.ne.s32.totalorder %s165, %s167
      %p174 = scmp.eq.s32.totalorder %s26, 1
      %p175 = por %p173, %p174
      %p176 = scmp.ne.s32.totalorder %s167, %s168
      %p177 = scmp.eq.s32.totalorder %s26, 0
      %p178 = por %p176, %p177
      %p179 = scmp.ne.s32.totalorder %s167, %s168
      %p180 = scmp.eq.s32.totalorder %s27, 1
      %p181 = por %p179, %p180
      %p183 = scmp.ne.s32.totalorder %s168, %s182
      %p184 = scmp.eq.s32.totalorder %s27, 0
      %p185 = por %p183, %p184
      %s187 = sadd.s32 %s186, 1
      %p190 = scmp.eq.s32.totalorder %s21, 1
      %p191 = scmp.ne.s32.totalorder %s186, %s188
      %p192 = scmp.eq.s32.totalorder %s21, 0
      %p193 = por %p191, %p192
      %p194 = scmp.ne.s32.totalorder %s186, %s188
      %p195 = scmp.eq.s32.totalorder %s26, 1
      %p196 = por %p194, %p195
      %p197 = scmp.ne.s32.totalorder %s188, %s189
      %p198 = scmp.eq.s32.totalorder %s26, 0
      %p199 = por %p197, %p198
      %p200 = scmp.ne.s32.totalorder %s188, %s189
      %p201 = scmp.eq.s32.totalorder %s27, 1
      %p202 = por %p200, %p201
      %p204 = scmp.ne.s32.totalorder %s189, %s203
      %p205 = scmp.eq.s32.totalorder %s27, 0
      %p206 = por %p204, %p205
      %s208 = sadd.s32 %s207, 1
      %p211 = scmp.eq.s32.totalorder %s21, 1
      %p212 = scmp.ne.s32.totalorder %s207, %s209
      %p213 = scmp.eq.s32.totalorder %s21, 0
      %p214 = por %p212, %p213
      %p215 = scmp.ne.s32.totalorder %s207, %s209
      %p216 = scmp.eq.s32.totalorder %s26, 1
      %p217 = por %p215, %p216
      %p218 = scmp.ne.s32.totalorder %s209, %s210
      %p219 = scmp.eq.s32.totalorder %s26, 0
      %p220 = por %p218, %p219
      %p221 = scmp.ne.s32.totalorder %s209, %s210
      %p222 = scmp.eq.s32.totalorder %s27, 1
      %p223 = por %p221, %p222
      %p225 = scmp.ne.s32.totalorder %s210, %s224
      %p226 = scmp.eq.s32.totalorder %s27, 0
      %p227 = por %p225, %p226
      %s229 = sadd.s32 %s228, 1
      %p232 = scmp.eq.s32.totalorder %s21, 1
      %p233 = scmp.ne.s32.totalorder %s228, %s230
      %p234 = scmp.eq.s32.totalorder %s21, 0
      %p235 = por %p233, %p234
      %p236 = scmp.ne.s32.totalorder %s228, %s230
      %p237 = scmp.eq.s32.totalorder %s26, 1
      %p238 = por %p236, %p237
      %p239 = scmp.ne.s32.totalorder %s230, %s231
      %p240 = scmp.eq.s32.totalorder %s26, 0
      %p241 = por %p239, %p240
      %p242 = scmp.ne.s32.totalorder %s230, %s231
      %p243 = scmp.eq.s32.totalorder %s27, 1
      %p244 = por %p242, %p243
      %p246 = scmp.ne.s32.totalorder %s231, %s245
      %p247 = scmp.eq.s32.totalorder %s27, 0
      %p248 = por %p246, %p247
      %s250 = sadd.s32 %s249, 1
      %p253 = scmp.eq.s32.totalorder %s21, 1
      %p254 = scmp.ne.s32.totalorder %s249, %s251
      %p255 = scmp.eq.s32.totalorder %s21, 0
      %p256 = por %p254, %p255
      %p257 = scmp.ne.s32.totalorder %s249, %s251
      %p258 = scmp.eq.s32.totalorder %s26, 1
      %p259 = por %p257, %p258
      %p260 = scmp.ne.s32.totalorder %s251, %s252
      %p261 = scmp.eq.s32.totalorder %s26, 0
      %p262 = por %p260, %p261
      %p263 = scmp.ne.s32.totalorder %s251, %s252
      %p264 = scmp.eq.s32.totalorder %s27, 1
      %p265 = por %p263, %p264
      %p267 = scmp.ne.s32.totalorder %s252, %s266
      %p268 = scmp.eq.s32.totalorder %s27, 0
      %p269 = por %p267, %p268
      %s271 = sadd.s32 %s270, 1
      %p274 = scmp.eq.s32.totalorder %s21, 1
      %p275 = scmp.ne.s32.totalorder %s270, %s272
      %p276 = scmp.eq.s32.totalorder %s21, 0
      %p277 = por %p275, %p276
      %p278 = scmp.ne.s32.totalorder %s270, %s272
      %p279 = scmp.eq.s32.totalorder %s26, 1
      %p280 = por %p278, %p279
      %p281 = scmp.ne.s32.totalorder %s272, %s273
      %p282 = scmp.eq.s32.totalorder %s26, 0
      %p283 = por %p281, %p282
      %p284 = scmp.ne.s32.totalorder %s272, %s273
      %p285 = scmp.eq.s32.totalorder %s27, 1
      %p286 = por %p284, %p285
      %p288 = scmp.ne.s32.totalorder %s273, %s287
      %p289 = scmp.eq.s32.totalorder %s27, 0
      %p290 = por %p288, %p289
      %s292 = sadd.s32 %s291, 1
      %p295 = scmp.eq.s32.totalorder %s21, 1
      %p296 = scmp.ne.s32.totalorder %s291, %s293
      %p297 = scmp.eq.s32.totalorder %s21, 0
      %p298 = por %p296, %p297
      %p299 = scmp.ne.s32.totalorder %s291, %s293
      %p300 = scmp.eq.s32.totalorder %s26, 1
      %p301 = por %p299, %p300
      %p302 = scmp.ne.s32.totalorder %s293, %s294
      %p303 = scmp.eq.s32.totalorder %s26, 0
      %p304 = por %p302, %p303
      %p305 = scmp.ne.s32.totalorder %s293, %s294
      %p306 = scmp.eq.s32.totalorder %s27, 1
      %p307 = por %p305, %p306
      %p309 = scmp.ne.s32.totalorder %s294, %s308
      %p310 = scmp.eq.s32.totalorder %s27, 0
      %p311 = por %p309, %p310
      %s313 = sadd.s32 %s312, 1
      %p316 = scmp.eq.s32.totalorder %s21, 1
      %p317 = scmp.ne.s32.totalorder %s312, %s314
      %p318 = scmp.eq.s32.totalorder %s21, 0
      %p319 = por %p317, %p318
      %p320 = scmp.ne.s32.totalorder %s312, %s314
      %p321 = scmp.eq.s32.totalorder %s26, 1
      %p322 = por %p320, %p321
      %p323 = scmp.ne.s32.totalorder %s314, %s315
      %p324 = scmp.eq.s32.totalorder %s26, 0
      %p325 = por %p323, %p324
      %p326 = scmp.ne.s32.totalorder %s314, %s315
      %p327 = scmp.eq.s32.totalorder %s27, 1
      %p328 = por %p326, %p327
      %p330 = scmp.ne.s32.totalorder %s315, %s329
      %p331 = scmp.eq.s32.totalorder %s27, 0
      %p332 = por %p330, %p331
      %p333 = scmp.le.s32.totalorder 1, %s21
      %p334 = scmp.lt.s32.totalorder %s21, 3
      %p335 = pnand %p333, %p334
      %p336 = pneg %p335
      // Predicated region
      $region9: #{tpu_custom_call.1} parent=5 // pred_check
        _
      $region10: #{tpu_custom_call.1} parent=5 // pred_check_branch
        %338 = sbr.rel (%p335) target = $region12
      $region11: #{tpu_custom_call.1} parent=5 // pred_region
        %s339 = ssub.s32 %s21, 1
        // Predicated region
        $region13: #{tpu_custom_call.1} parent=11 // pred_check
          %p340 = pneg %p94
        $region14: #{tpu_custom_call.1} parent=11 // pred_check_branch
          %342 = sbr.rel (%p340) target = $region16
        $region15: #{tpu_custom_call.1} parent=11 // pred_region
          _
        $region16: #{tpu_custom_call.1} parent=11 // pred_fallthru
          _
        // Predicated region
        $region17: #{tpu_custom_call.1} parent=11 // pred_check
          %p343 = pneg %p115
        $region18: #{tpu_custom_call.1} parent=11 // pred_check_branch
          %345 = sbr.rel (%p343) target = $region20
        $region19: #{tpu_custom_call.1} parent=11 // pred_region
          %347 = vsyncadd [#allocation6], 0
          %s349 = sshll.u32 %s3, 4
          %s350 = int_to_ptr.hbm [resolvable:$true] %s349
          %s351 = sshll.u32 [#allocation5], 4
          %s352 = int_to_ptr.vmem [resolvable:$true] %s351
          %354 = dma.hbm_to_vmem [thread:$0]  %s350, 64, %s352, [#allocation6]
        $region20: #{tpu_custom_call.1} parent=11 // pred_fallthru
          _
        // Predicated region
        $region21: #{tpu_custom_call.1} parent=11 // pred_check
          %p355 = pneg %p136
        $region22: #{tpu_custom_call.1} parent=11 // pred_check_branch
          %357 = sbr.rel (%p355) target = $region24
        $region23: #{tpu_custom_call.1} parent=11 // pred_region
          _
        $region24: #{tpu_custom_call.1} parent=11 // pred_fallthru
          _
        // Predicated region
        $region25: #{tpu_custom_call.1} parent=11 // pred_check
          %p358 = pneg %p157
        $region26: #{tpu_custom_call.1} parent=11 // pred_check_branch
          %360 = sbr.rel (%p358) target = $region28
        $region27: #{tpu_custom_call.1} parent=11 // pred_region
          _
        $region28: #{tpu_custom_call.1} parent=11 // pred_fallthru
          _
        // Predicated region
        $region29: #{tpu_custom_call.1} parent=11 // pred_check
          %p361 = pneg %p178
        $region30: #{tpu_custom_call.1} parent=11 // pred_check_branch
          %363 = sbr.rel (%p361) target = $region32
        $region31: #{tpu_custom_call.1} parent=11 // pred_region
          %365 = vsyncadd [#allocation8], 0
          %s367 = sshll.u32 %s6, 4
          %s368 = int_to_ptr.hbm [resolvable:$true] %s367
          %s369 = sshll.u32 [#allocation7], 4
          %s370 = int_to_ptr.vmem [resolvable:$true] %s369
          %372 = dma.hbm_to_vmem [thread:$0]  %s368, 16, %s370, [#allocation8]
        $region32: #{tpu_custom_call.1} parent=11 // pred_fallthru
          _
        // Predicated region
        $region33: #{tpu_custom_call.1} parent=11 // pred_check
          %p373 = pneg %p199
        $region34: #{tpu_custom_call.1} parent=11 // pred_check_branch
          %375 = sbr.rel (%p373) target = $region36
        $region35: #{tpu_custom_call.1} parent=11 // pred_region
          _
        $region36: #{tpu_custom_call.1} parent=11 // pred_fallthru
          _
        // Predicated region
        $region37: #{tpu_custom_call.1} parent=11 // pred_check
          %p376 = pneg %p220
        $region38: #{tpu_custom_call.1} parent=11 // pred_check_branch
          %378 = sbr.rel (%p376) target = $region40
        $region39: #{tpu_custom_call.1} parent=11 // pred_region
          %380 = vsyncadd [#allocation8], 0
          %s382 = sshll.u32 %s8, 4
          %s383 = int_to_ptr.hbm [resolvable:$true] %s382
          %s384 = sshll.u32 [#allocation9], 4
          %s385 = int_to_ptr.vmem [resolvable:$true] %s384
          %387 = dma.hbm_to_vmem [thread:$0]  %s383, 16, %s385, [#allocation8]
        $region40: #{tpu_custom_call.1} parent=11 // pred_fallthru
          _
        // Predicated region
        $region41: #{tpu_custom_call.1} parent=11 // pred_check
          %p388 = pneg %p241
        $region42: #{tpu_custom_call.1} parent=11 // pred_check_branch
          %390 = sbr.rel (%p388) target = $region44
        $region43: #{tpu_custom_call.1} parent=11 // pred_region
          _
        $region44: #{tpu_custom_call.1} parent=11 // pred_fallthru
          _
        // Predicated region
        $region45: #{tpu_custom_call.1} parent=11 // pred_check
          %p391 = pneg %p262
        $region46: #{tpu_custom_call.1} parent=11 // pred_check_branch
          %393 = sbr.rel (%p391) target = $region48
        $region47: #{tpu_custom_call.1} parent=11 // pred_region
          _
        $region48: #{tpu_custom_call.1} parent=11 // pred_fallthru
          _
        // Predicated region
        $region49: #{tpu_custom_call.1} parent=11 // pred_check
          %p394 = pneg %p283
        $region50: #{tpu_custom_call.1} parent=11 // pred_check_branch
          %396 = sbr.rel (%p394) target = $region52
        $region51: #{tpu_custom_call.1} parent=11 // pred_region
          _
        $region52: #{tpu_custom_call.1} parent=11 // pred_fallthru
          _
        // Predicated region
        $region53: #{tpu_custom_call.1} parent=11 // pred_check
          %p397 = pneg %p304
        $region54: #{tpu_custom_call.1} parent=11 // pred_check_branch
          %399 = sbr.rel (%p397) target = $region56
        $region55: #{tpu_custom_call.1} parent=11 // pred_region
          _
        $region56: #{tpu_custom_call.1} parent=11 // pred_fallthru
          _
      $region12: #{tpu_custom_call.1} parent=5 // pred_fallthru
        _
      %p400 = scmp.lt.s32.totalorder %s21, 2
      // Predicated region
      $region57: #{tpu_custom_call.1} parent=5 // pred_check
        %p401 = pneg %p400
      $region58: #{tpu_custom_call.1} parent=5 // pred_check_branch
        %403 = sbr.rel (%p401) target = $region60
      $region59: #{tpu_custom_call.1} parent=5 // pred_region
        // Predicated region
        $region61: #{tpu_custom_call.1} parent=59 // pred_check
          %p404 = pneg %p41
        $region62: #{tpu_custom_call.1} parent=59 // pred_check_branch
          %406 = sbr.rel (%p404) target = $region64
        $region63: #{tpu_custom_call.1} parent=59 // pred_region
          %s407 = sand.u32 %s31, 1
          %s408 = sand.u32 %s31, 1
          %s409 = smul.addr %s408, 48
          %s410 = scalar_lea.vmem [#allocation4], %s409
          %s411 = smul.addr %s21, 3
          %s412 = smul.addr %s411, 8
          %s413 = scalar_lea.vmem %s0, %s412
          // Predicated region
          $region65: #{tpu_custom_call.1} parent=63 // pred_check
            _
          $region66: #{tpu_custom_call.1} parent=63 // pred_check_branch
            %415 = sbr.rel (0) target = $region68
          $region67: #{tpu_custom_call.1} parent=63 // pred_region
            // Predicated region
            $region69: #{tpu_custom_call.1} parent=67 // pred_check
              _
            $region70: #{tpu_custom_call.1} parent=67 // pred_check_branch
              %417 = sbr.rel (0) target = $region72
            $region71: #{tpu_custom_call.1} parent=67 // pred_region
              // Predicated region
              $region84: #{tpu_custom_call.1} parent=71 // pred_check
                _
              $region85: #{tpu_custom_call.1} parent=71 // pred_check_branch
                %443 = sbr.rel (0) target = $region87
              $region86: #{tpu_custom_call.1} parent=71 // pred_region
                loop: start=0, step=1, limit=1
                $region88: #{tpu_custom_call.1} parent=86 // loop_pre_header
                  _
                $region89: #{tpu_custom_call.1} parent=86 // loop_header
                  %s445 = sphi 0, %s449
                  %p446 = scmp.ge.s32.totalorder %s445, 1
                  %s450 = sphi %s413, %s413
                  %s451 = sphi %s410, %s410
                $region90: #{tpu_custom_call.1} parent=86 // loop_header_branch
                  %448 = sbr.rel (%p446) target = $region94
                $region91: #{tpu_custom_call.1} parent=86 // loop_body
                  %v452 = vld [vmem:[%s450] sm:$0xff]
                  %453 = vst [vmem:[%s451] sm:$0xff] %v452
                  %v454 = vld [vmem:[%s450 + $0x8] sm:$0xff]
                  %455 = vst [vmem:[%s451 + $0x8] sm:$0xff] %v454
                  %v456 = vld [vmem:[%s450 + $0x10] sm:$0xff]
                  %457 = vst [vmem:[%s451 + $0x10] sm:$0xff] %v456
                  %v458 = vld [vmem:[%s450 + $0x30] sm:$0xff]
                  %459 = vst [vmem:[%s451 + $0x18] sm:$0xff] %v458
                  %v460 = vld [vmem:[%s450 + $0x38] sm:$0xff]
                  %461 = vst [vmem:[%s451 + $0x20] sm:$0xff] %v460
                  %v462 = vld [vmem:[%s450 + $0x40] sm:$0xff]
                  %463 = vst [vmem:[%s451 + $0x28] sm:$0xff] %v462
                $region92: #{tpu_custom_call.1} parent=86 // loop_footer
                  %s449 = sadd.s32 1, %s445
                $region93: #{tpu_custom_call.1} parent=86 // loop_footer_branch
                  %444 = sbr.rel target = $region89
                $region94: #{tpu_custom_call.1} parent=86 // loop_exit
                  _
              $region87: #{tpu_custom_call.1} parent=71 // pred_fallthru
                _
              // Predicated region
              $region95: #{tpu_custom_call.1} parent=71 // pred_check
                _
              $region96: #{tpu_custom_call.1} parent=71 // pred_check_branch
                %465 = sbr.rel target = $region98
              $region97: #{tpu_custom_call.1} parent=71 // pred_region
                _
              $region98: #{tpu_custom_call.1} parent=71 // pred_fallthru
                _
            $region72: #{tpu_custom_call.1} parent=67 // pred_fallthru
              _
            // Predicated region
            $region73: #{tpu_custom_call.1} parent=67 // pred_check
              _
            $region74: #{tpu_custom_call.1} parent=67 // pred_check_branch
              %419 = sbr.rel target = $region76
            $region75: #{tpu_custom_call.1} parent=67 // pred_region
              %s421 = ssub.s32 256, 1
              loop: start=0, step=1, limit=1
              $region77: #{tpu_custom_call.1} parent=75 // loop_pre_header
                _
              $region78: #{tpu_custom_call.1} parent=75 // loop_header
                %s423 = sphi 0, %s427
                %p424 = scmp.ge.s32.totalorder %s423, 1
                %s428 = sphi %s413, %s413
                %s429 = sphi %s410, %s410
              $region79: #{tpu_custom_call.1} parent=75 // loop_header_branch
                %426 = sbr.rel (%p424) target = $region83
              $region80: #{tpu_custom_call.1} parent=75 // loop_body
                %v430 = vld [vmem:[%s428] sm:%s421]
                %431 = vst [vmem:[%s429] sm:%s421] %v430
                %v432 = vld [vmem:[%s428 + $0x8] sm:%s421]
                %433 = vst [vmem:[%s429 + $0x8] sm:%s421] %v432
                %v434 = vld [vmem:[%s428 + $0x10] sm:%s421]
                %435 = vst [vmem:[%s429 + $0x10] sm:%s421] %v434
                %v436 = vld [vmem:[%s428 + $0x30] sm:%s421]
                %437 = vst [vmem:[%s429 + $0x18] sm:%s421] %v436
                %v438 = vld [vmem:[%s428 + $0x38] sm:%s421]
                %439 = vst [vmem:[%s429 + $0x20] sm:%s421] %v438
                %v440 = vld [vmem:[%s428 + $0x40] sm:%s421]
                %441 = vst [vmem:[%s429 + $0x28] sm:%s421] %v440
              $region81: #{tpu_custom_call.1} parent=75 // loop_footer
                %s427 = sadd.s32 1, %s423
              $region82: #{tpu_custom_call.1} parent=75 // loop_footer_branch
                %422 = sbr.rel target = $region78
              $region83: #{tpu_custom_call.1} parent=75 // loop_exit
                _
            $region76: #{tpu_custom_call.1} parent=67 // pred_fallthru
              _
          $region68: #{tpu_custom_call.1} parent=63 // pred_fallthru
            _
          %466 = vnop
        $region64: #{tpu_custom_call.1} parent=59 // pred_fallthru
          _
        // Predicated region
        $region99: #{tpu_custom_call.1} parent=59 // pred_check
          %p467 = pneg %p67
        $region100: #{tpu_custom_call.1} parent=59 // pred_check_branch
          %469 = sbr.rel (%p467) target = $region102
        $region101: #{tpu_custom_call.1} parent=59 // pred_region
          %p470 = scmp.lt.s32.totalorder %s21, 1
          %s471 = scalar_select %p470, %s21, 1
          %s472 = smul.addr %s471, 6
          %s473 = smul.addr %s472, 4
          %s474 = scalar_lea.vmem %s1, %s473
        $region102: #{tpu_custom_call.1} parent=59 // pred_fallthru
          _
      $region60: #{tpu_custom_call.1} parent=5 // pred_fallthru
        _
      %p475 = scmp.le.s32.totalorder 1, %s21
      %p476 = scmp.lt.s32.totalorder %s21, 3
      %p477 = pnand %p475, %p476
      %p478 = pneg %p477
      // Predicated region
      $region103: #{tpu_custom_call.1} parent=5 // pred_check
        _
      $region104: #{tpu_custom_call.1} parent=5 // pred_check_branch
        %480 = sbr.rel (%p477) target = $region106
      $region105: #{tpu_custom_call.1} parent=5 // pred_region
        %s481 = ssub.s32 %s21, 1
        %s482 = sand.u32 %s34, 1
        %s483 = sand.u32 %s34, 1
        %s484 = smul.addr %s483, 48
        %s485 = scalar_lea.vmem [#allocation4], %s484
        // Predicated region
        $region107: #{tpu_custom_call.1} parent=105 // pred_check
          %p486 = pneg %p47
        $region108: #{tpu_custom_call.1} parent=105 // pred_check_branch
          %488 = sbr.rel (%p486) target = $region110
        $region109: #{tpu_custom_call.1} parent=105 // pred_region
          _
        $region110: #{tpu_custom_call.1} parent=105 // pred_fallthru
          _
        // Predicated region
        $region111: #{tpu_custom_call.1} parent=105 // pred_check
          %p489 = pneg %p115
        $region112: #{tpu_custom_call.1} parent=105 // pred_check_branch
          %491 = sbr.rel (%p489) target = $region114
        $region113: #{tpu_custom_call.1} parent=105 // pred_region
          %493 = dma.done [#allocation6], 64
        $region114: #{tpu_custom_call.1} parent=105 // pred_fallthru
          _
        // Predicated region
        $region115: #{tpu_custom_call.1} parent=105 // pred_check
          %p494 = pneg %p178
        $region116: #{tpu_custom_call.1} parent=105 // pred_check_branch
          %496 = sbr.rel (%p494) target = $region118
        $region117: #{tpu_custom_call.1} parent=105 // pred_region
          %498 = dma.done [#allocation8], 16
        $region118: #{tpu_custom_call.1} parent=105 // pred_fallthru
          _
        // Predicated region
        $region119: #{tpu_custom_call.1} parent=105 // pred_check
          %p499 = pneg %p220
        $region120: #{tpu_custom_call.1} parent=105 // pred_check_branch
          %501 = sbr.rel (%p499) target = $region122
        $region121: #{tpu_custom_call.1} parent=105 // pred_region
          %503 = dma.done [#allocation8], 16
        $region122: #{tpu_custom_call.1} parent=105 // pred_fallthru
          _
        %s504 = sand.u32 %s34, 1
        %s505 = sand.u32 %s34, 1
        %s506 = smul.addr %s505, 48
        %s507 = scalar_lea.vmem [#allocation4], %s506
        %p508 = pneg %p47
        %p509 = pneg %p44
        %p510 = scmp.lt.s32.totalorder %s26, 1
        %s511 = scalar_select %p510, %s26, 1
        %s512 = smul.addr %s511, 6
        %s513 = smul.addr %s512, 4
        %s514 = scalar_lea.vmem %s1, %s513
        %p515 = pneg %p73
        %p516 = pneg %p70
        %p517 = pneg %p94
        %p518 = pneg %p91
        %p519 = pneg %p115
        %p520 = pneg %p112
        %p521 = pneg %p136
        %p522 = pneg %p133
        %p523 = pneg %p157
        %p524 = pneg %p154
        %p525 = pneg %p178
        %p526 = pneg %p175
        %p527 = pneg %p199
        %p528 = pneg %p196
        %p529 = pneg %p220
        %p530 = pneg %p217
        %p531 = pneg %p241
        %p532 = pneg %p238
        %p533 = pneg %p262
        %p534 = pneg %p259
        %p535 = pneg %p283
        %p536 = pneg %p280
        %p537 = pneg %p304
        %p538 = pneg %p301
        %p539 = pneg %p325
        %p540 = pneg %p322
        %p541 = scmp.lt.s32.totalorder %s26, 1
        %s542 = scalar_select %p541, %s26, 1
        %s543 = smul.addr %s542, 6
        %s544 = smul.addr %s543, 4
        %s545 = scalar_lea.vmem %s1, %s544
        %p547 = scmp.eq.s32.totalorder %s26, 0
        // Predicated region
        $region123: #{tpu_custom_call.1} parent=105 // pred_check
          %p548 = pneg %p547
        $region124: #{tpu_custom_call.1} parent=105 // pred_check_branch
          %550 = sbr.rel (%p548) target = $region126
        $region125: #{tpu_custom_call.1} parent=105 // pred_region
          %v551 = vld [vmem:[%s2] sm:$0xf]
          %v552 = vld [vmem:[%s2 + $0x4] sm:$0xf]
          %v553 = vld [vmem:[%s2 + $0x8] sm:$0xf]
          %v554 = vld [vmem:[%s2 + $0xc] sm:$0xf]
          %v555 = vld [vmem:[%s2 + $0x10] sm:$0xf]
          %v556 = vld [vmem:[%s2 + $0x14] sm:$0xf]
          %v557 = vld [vmem:[%s7] sm:$0xf]
          %v558 = vld [vmem:[%s7 + $0x4] sm:$0xf]
          %v559 = vld [vmem:[%s7 + $0x8] sm:$0x1]
          %v560 = vld [vmem:[#allocation9] sm:$0x1]
          %v562 = vperm.slane %v560, 0
          %v570 = vunpack.c.l.b16 %v551
          %v571 = vunpack.c.l.b16 %v552
          %v572 = vunpack.c.l.b16 %v553
          %v573 = vunpack.c.l.b16 %v554
          %v574 = vunpack.c.l.b16 %v555
          %v575 = vunpack.c.l.b16 %v556
          %v576 = vpack.c.b16 %v571, %v570
          %v577 = vpack.c.b16 %v573, %v572
          %v578 = vpack.c.b16 %v575, %v574
          %v582 = vunpack.c.l.b16 %v557
          %v583 = vunpack.c.l.b16 %v558
          %v584 = vunpack.c.l.b16 %v559
          %v585 = vpack.c.b16 %v583, %v582
          %v586 = vpack.c.b16 %v584, %v584
          %vm588 = vcmask 138240
          %v590 = vsel %vm588, %v576, 0
          %v593 = vsel %vm588, %v577, 0
          %v596 = vsel %vm588, %v578, 0
          %vm598 = vcmask 1040384
          %v599 = vsel 0, 4294967295, 65535
          %v600 = vsel %vm598, %v599, 0
          %v602 = vand.u32 %v586, %v600
          %604 = vmatpush.bf16.msra.mxu0 0
          %605 = vmatpush.bf16.msra.mxu0 0
          %606 = vmatpush.bf16.msra.mxu0 0
          %607 = vmatpush.bf16.msra.mxu0 0
          %608 = vmatpush.bf16.msra.mxu0 0
          %609 = vmatpush.bf16.msra.mxu0 0
          %610 = vmatpush.bf16.msra.mxu0 %v602
          %611 = vmatpush.bf16.msra.mxu0 %v585
          %612 = vmatmul.bf16.gmra.mxu0 %v590
          %v613 = vpop.f32.mrf.mxu0
          %v614 = vadd.f32 %v562, %v613
          %v615 = vpop.f32.mrf.mxu0
          %v616 = vadd.f32 %v562, %v615
          %617 = vmatmul.bf16.gmra.mxu0 %v593
          %v618 = vpop.f32.mrf.mxu0
          %v619 = vadd.f32 %v562, %v618
          %v620 = vpop.f32.mrf.mxu0
          %v621 = vadd.f32 %v562, %v620
          %622 = vmatmul.bf16.gmra.mxu0 %v596
          %v623 = vpop.f32.mrf.mxu0
          %v624 = vadd.f32 %v562, %v623
          %v625 = vpop.f32.mrf.mxu0
          %v626 = vadd.f32 %v562, %v625
          %627 = vdwg.mxu0
          %vm628 = vcmp.gt.f32.partialorder %v614, 0.0
          %vm629 = vcmp.gt.f32.partialorder %v616, 0.0
          %vm630 = vcmp.gt.f32.partialorder %v619, 0.0
          %vm631 = vcmp.gt.f32.partialorder %v621, 0.0
          %vm632 = vcmp.gt.f32.partialorder %v624, 0.0
          %vm633 = vcmp.gt.f32.partialorder %v626, 0.0
          %v634 = vmul.f32 %v614, 0.01
          %v635 = vmul.f32 %v616, 0.01
          %v636 = vmul.f32 %v619, 0.01
          %v637 = vmul.f32 %v621, 0.01
          %v638 = vmul.f32 %v624, 0.01
          %v639 = vmul.f32 %v626, 0.01
          %v640 = vsel %vm628, %v614, %v634
          %v641 = vsel %vm629, %v616, %v635
          %v642 = vsel %vm630, %v619, %v636
          %v643 = vsel %vm631, %v621, %v637
          %v644 = vsel %vm632, %v624, %v638
          %v645 = vsel %vm633, %v626, %v639
          %v646 = vpack.c.bf16 %v640, %v640
          %v647 = vpack.c.bf16 %v641, %v641
          %v648 = vpack.c.bf16 %v642, %v642
          %v649 = vpack.c.bf16 %v643, %v643
          %v650 = vpack.c.bf16 %v644, %v644
          %v651 = vpack.c.bf16 %v645, %v645
          %vm652 = vcmask 134144
          %653 = vst.msk [vmem:[#allocation2] sm:$0xf] %vm652, %v646
          %654 = vst.msk [vmem:[#allocation2 + $0x4] sm:$0xf] %vm652, %v647
          %655 = vst.msk [vmem:[#allocation2 + $0x8] sm:$0xf] %vm652, %v648
          %656 = vst.msk [vmem:[#allocation2 + $0xc] sm:$0xf] %vm652, %v649
          %657 = vst.msk [vmem:[#allocation2 + $0x10] sm:$0xf] %vm652, %v650
          %658 = vst.msk [vmem:[#allocation2 + $0x14] sm:$0xf] %vm652, %v651
          %vm659 = vcmask 261120
          %660 = vst.msk [vmem:[%s13] sm:$0xff] %vm659, 0.0
          %661 = vst.msk [vmem:[%s13 + $0x8] sm:$0xff] %vm659, 0.0
          %662 = vst.msk [vmem:[%s13 + $0x10] sm:$0xff] %vm659, 0.0
          %663 = vst.msk [vmem:[%s13 + $0x18] sm:$0xff] %vm659, 0.0
          %664 = vst.msk [vmem:[%s13 + $0x20] sm:$0xff] %vm659, 0.0
          %665 = vst.msk [vmem:[%s13 + $0x28] sm:$0xff] %vm659, 0.0
          %vm666 = vcmask 0
          %667 = vst.msk [vmem:[#allocation3] sm:$0x1] %vm666, 0.0
        $region126: #{tpu_custom_call.1} parent=105 // pred_fallthru
          _
        %v668 = vld [vmem:[%s485] sm:$0xff]
        %v669 = vld [vmem:[%s485 + $0x8] sm:$0xff]
        %v670 = vld [vmem:[%s485 + $0x10] sm:$0xff]
        %v671 = vld [vmem:[%s485 + $0x18] sm:$0xff]
        %v672 = vld [vmem:[%s485 + $0x20] sm:$0xff]
        %v673 = vld [vmem:[%s485 + $0x28] sm:$0xff]
        %v674 = vpack.c.bf16 %v669, %v668
        %v675 = vpack.c.bf16 %v671, %v670
        %v676 = vpack.c.bf16 %v673, %v672
        %v677 = vld [vmem:[%s545] sm:$0xf]
        %v678 = vld [vmem:[%s545 + $0x4] sm:$0xf]
        %v679 = vld [vmem:[%s545 + $0x8] sm:$0xf]
        %v680 = vld [vmem:[%s545 + $0xc] sm:$0xf]
        %v681 = vld [vmem:[%s545 + $0x10] sm:$0xf]
        %v682 = vld [vmem:[%s545 + $0x14] sm:$0xf]
        %v683 = vld [vmem:[#allocation5] sm:$0xf]
        %v684 = vld [vmem:[%s4] sm:$0x1]
        %v686 = vperm.slane %v684, 0
        %v694 = vunpack.c.l.b16 %v677
        %v695 = vunpack.c.l.b16 %v678
        %v696 = vunpack.c.l.b16 %v679
        %v697 = vunpack.c.l.b16 %v680
        %v698 = vunpack.c.l.b16 %v681
        %v699 = vunpack.c.l.b16 %v682
        %v700 = vpack.c.b16 %v695, %v694
        %v701 = vpack.c.b16 %v697, %v696
        %v702 = vpack.c.b16 %v699, %v698
        %vm703 = vcmask 64512
        %v705 = vsel %vm703, %v700, 0
        %v708 = vsel %vm703, %v701, 0
        %v711 = vsel %vm703, %v702, 0
        %vm713 = vcmask 1043456
        %v715 = vsel %vm713, %v683, 0
        %717 = vmatpush.bf16.msra.mxu0 0
        %718 = vmatpush.bf16.msra.mxu0 0
        %719 = vmatpush.bf16.msra.mxu0 0
        %720 = vmatpush.bf16.msra.mxu0 0
        %721 = vmatpush.bf16.msra.mxu0 0
        %722 = vmatpush.bf16.msra.mxu0 0
        %723 = vmatpush.bf16.msra.mxu0 0
        %724 = vmatpush.bf16.msra.mxu0 %v715
        %725 = vmatmul.bf16.gmra.mxu0 %v705
        %v726 = vpop.f32.mrf.mxu0
        %v727 = vadd.f32 %v686, %v726
        %v728 = vpop.f32.mrf.mxu0
        %v729 = vadd.f32 %v686, %v728
        %730 = vmatmul.bf16.gmra.mxu0 %v708
        %v731 = vpop.f32.mrf.mxu0
        %v732 = vadd.f32 %v686, %v731
        %v733 = vpop.f32.mrf.mxu0
        %v734 = vadd.f32 %v686, %v733
        %735 = vmatmul.bf16.gmra.mxu0 %v711
        %v736 = vpop.f32.mrf.mxu0
        %v737 = vadd.f32 %v686, %v736
        %v738 = vpop.f32.mrf.mxu0
        %v739 = vadd.f32 %v686, %v738
        %740 = vdwg.mxu0
        %vm741 = vcmp.gt.f32.partialorder %v727, 0.0
        %vm742 = vcmp.gt.f32.partialorder %v729, 0.0
        %vm743 = vcmp.gt.f32.partialorder %v732, 0.0
        %vm744 = vcmp.gt.f32.partialorder %v734, 0.0
        %vm745 = vcmp.gt.f32.partialorder %v737, 0.0
        %vm746 = vcmp.gt.f32.partialorder %v739, 0.0
        %v747 = vmul.f32 %v727, 0.01
        %v748 = vmul.f32 %v729, 0.01
        %v749 = vmul.f32 %v732, 0.01
        %v750 = vmul.f32 %v734, 0.01
        %v751 = vmul.f32 %v737, 0.01
        %v752 = vmul.f32 %v739, 0.01
        %v753 = vsel %vm741, %v727, %v747
        %v754 = vsel %vm742, %v729, %v748
        %v755 = vsel %vm743, %v732, %v749
        %v756 = vsel %vm744, %v734, %v750
        %v757 = vsel %vm745, %v737, %v751
        %v758 = vsel %vm746, %v739, %v752
        %v759 = vld [vmem:[%s5] sm:$0xf]
        %v760 = vld [vmem:[%s5 + $0x4] sm:$0xf]
        %v761 = vld [vmem:[%s5 + $0x8] sm:$0xf]
        %v762 = vld [vmem:[%s5 + $0xc] sm:$0xf]
        %v763 = vld [vmem:[%s5 + $0x10] sm:$0xf]
        %v764 = vld [vmem:[%s5 + $0x14] sm:$0xf]
        %v765 = vld [vmem:[%s5 + $0x18] sm:$0xf]
        %v766 = vld [vmem:[%s5 + $0x1c] sm:$0xf]
        %v767 = vld [vmem:[%s5 + $0x20] sm:$0xf]
        %v768 = vld [vmem:[%s5 + $0x24] sm:$0xf]
        %v769 = vld [vmem:[%s5 + $0x28] sm:$0xf]
        %v770 = vld [vmem:[%s5 + $0x2c] sm:$0x7]
        %v771 = vld [vmem:[#allocation7] sm:$0x1]
        %v773 = vperm.slane %v771, 0
        %v787 = vunpack.c.l.b16 %v759
        %v788 = vunpack.c.l.b16 %v760
        %v789 = vunpack.c.l.b16 %v761
        %v790 = vunpack.c.l.b16 %v762
        %v791 = vunpack.c.l.b16 %v763
        %v792 = vunpack.c.l.b16 %v764
        %v793 = vunpack.c.l.b16 %v765
        %v794 = vunpack.c.l.b16 %v766
        %v795 = vunpack.c.l.b16 %v767
        %v796 = vunpack.c.l.b16 %v768
        %v797 = vunpack.c.l.b16 %v769
        %v798 = vunpack.c.l.b16 %v770
        %v799 = vpack.c.b16 %v788, %v787
        %v800 = vpack.c.b16 %v790, %v789
        %v801 = vpack.c.b16 %v792, %v791
        %v802 = vpack.c.b16 %v794, %v793
        %v803 = vpack.c.b16 %v796, %v795
        %v804 = vpack.c.b16 %v798, %v797
        %vm810 = vcmask 769024
        %v812 = vsel %vm810, %v674, 0
        %v815 = vsel %vm810, %v675, 0
        %v818 = vsel %vm810, %v676, 0
        %vm820 = vcmask 1046528
        %v822 = vsel %vm820, %v804, 0
        %824 = vmatpush.bf16.msra.mxu0 0
        %825 = vmatpush.bf16.msra.mxu0 0
        %826 = vmatpush.bf16.msra.mxu0 %v822
        %827 = vmatpush.bf16.msra.mxu0 %v803
        %828 = vmatpush.bf16.msra.mxu0 %v802
        %829 = vmatpush.bf16.msra.mxu0 %v801
        %830 = vmatpush.bf16.msra.mxu0 %v800
        %831 = vmatpush.bf16.msra.mxu0 %v799
        %832 = vmatmul.bf16.gmra.mxu0 %v812
        %v833 = vpop.f32.mrf.mxu0
        %v834 = vadd.f32 %v773, %v833
        %v835 = vpop.f32.mrf.mxu0
        %v836 = vadd.f32 %v773, %v835
        %837 = vmatmul.bf16.gmra.mxu0 %v815
        %v838 = vpop.f32.mrf.mxu0
        %v839 = vadd.f32 %v773, %v838
        %v840 = vpop.f32.mrf.mxu0
        %v841 = vadd.f32 %v773, %v840
        %842 = vmatmul.bf16.gmra.mxu0 %v818
        %v843 = vpop.f32.mrf.mxu0
        %v844 = vadd.f32 %v773, %v843
        %v845 = vpop.f32.mrf.mxu0
        %v846 = vadd.f32 %v773, %v845
        %847 = vdwg.mxu0
        %vm848 = vcmp.gt.f32.partialorder %v834, 0.0
        %vm849 = vcmp.gt.f32.partialorder %v836, 0.0
        %vm850 = vcmp.gt.f32.partialorder %v839, 0.0
        %vm851 = vcmp.gt.f32.partialorder %v841, 0.0
        %vm852 = vcmp.gt.f32.partialorder %v844, 0.0
        %vm853 = vcmp.gt.f32.partialorder %v846, 0.0
        %v854 = vmul.f32 %v834, 0.01
        %v855 = vmul.f32 %v836, 0.01
        %v856 = vmul.f32 %v839, 0.01
        %v857 = vmul.f32 %v841, 0.01
        %v858 = vmul.f32 %v844, 0.01
        %v859 = vmul.f32 %v846, 0.01
        %v860 = vsel %vm848, %v834, %v854
        %v861 = vsel %vm849, %v836, %v855
        %v862 = vsel %vm850, %v839, %v856
        %v863 = vsel %vm851, %v841, %v857
        %v864 = vsel %vm852, %v844, %v858
        %v865 = vsel %vm853, %v846, %v859
        %v866 = vpack.c.bf16 %v754, %v753
        %v867 = vpack.c.bf16 %v756, %v755
        %v868 = vpack.c.bf16 %v758, %v757
        %v869 = vld [vmem:[%s9] sm:$0xf]
        %v870 = vld [vmem:[%s9 + $0x4] sm:$0xf]
        %v871 = vld [vmem:[%s9 + $0x8] sm:$0x3]
        %v872 = vpack.c.bf16 %v861, %v860
        %v873 = vpack.c.bf16 %v863, %v862
        %v874 = vpack.c.bf16 %v865, %v864
        %v875 = vld [vmem:[%s10] sm:$0xf]
        %v876 = vld [vmem:[%s10 + $0x4] sm:$0xf]
        %v879 = vunpack.c.l.b16 %v875
        %v880 = vunpack.c.l.b16 %v876
        %v881 = vpack.c.b16 %v880, %v879
        %vm883 = vcmask 130048
        %v885 = vsel %vm883, %v872, 0
        %v888 = vsel %vm883, %v873, 0
        %v891 = vsel %vm883, %v874, 0
        %893 = vmatpush.bf16.msra.mxu0 0
        %894 = vmatpush.bf16.msra.mxu0 0
        %895 = vmatpush.bf16.msra.mxu0 0
        %896 = vmatpush.bf16.msra.mxu0 0
        %897 = vmatpush.bf16.msra.mxu0 0
        %898 = vmatpush.bf16.msra.mxu0 0
        %899 = vmatpush.bf16.msra.mxu0 0
        %900 = vmatpush.bf16.msra.mxu0 %v881
        %901 = vmatmul.bf16.gmra.mxu0 %v885
        %v902 = vpop.f32.mrf.mxu0
        %v903 = vadd.f32 0.0, %v902
        %v904 = vpop.f32.mrf.mxu0
        %v905 = vadd.f32 0.0, %v904
        %906 = vmatmul.bf16.gmra.mxu0 %v888
        %v907 = vpop.f32.mrf.mxu0
        %v908 = vadd.f32 0.0, %v907
        %v909 = vpop.f32.mrf.mxu0
        %v910 = vadd.f32 0.0, %v909
        %911 = vmatmul.bf16.gmra.mxu0 %v891
        %v912 = vpop.f32.mrf.mxu0
        %v913 = vadd.f32 0.0, %v912
        %v914 = vpop.f32.mrf.mxu0
        %v915 = vadd.f32 0.0, %v914
        %916 = vdwg.mxu0
        %v920 = vunpack.c.l.b16 %v869
        %v921 = vunpack.c.l.b16 %v870
        %v922 = vunpack.c.l.b16 %v871
        %v923 = vpack.c.b16 %v921, %v920
        %v924 = vpack.c.b16 %v922, %v922
        %vm926 = vcmask 162816
        %v928 = vsel %vm926, %v866, 0
        %v931 = vsel %vm926, %v867, 0
        %v934 = vsel %vm926, %v868, 0
        %vm936 = vcmask 1041408
        %v938 = vsel %vm936, %v924, 0
        %940 = vmatpush.bf16.msra.mxu0 0
        %941 = vmatpush.bf16.msra.mxu0 0
        %942 = vmatpush.bf16.msra.mxu0 0
        %943 = vmatpush.bf16.msra.mxu0 0
        %944 = vmatpush.bf16.msra.mxu0 0
        %945 = vmatpush.bf16.msra.mxu0 0
        %946 = vmatpush.bf16.msra.mxu0 %v938
        %947 = vmatpush.bf16.msra.mxu0 %v923
        %948 = vmatmul.bf16.gmra.mxu0 %v928
        %v949 = vpop.f32.mrf.mxu0
        %v950 = vadd.f32 %v903, %v949
        %v951 = vpop.f32.mrf.mxu0
        %v952 = vadd.f32 %v905, %v951
        %953 = vmatmul.bf16.gmra.mxu0 %v931
        %v954 = vpop.f32.mrf.mxu0
        %v955 = vadd.f32 %v908, %v954
        %v956 = vpop.f32.mrf.mxu0
        %v957 = vadd.f32 %v910, %v956
        %958 = vmatmul.bf16.gmra.mxu0 %v934
        %v959 = vpop.f32.mrf.mxu0
        %v960 = vadd.f32 %v913, %v959
        %v961 = vpop.f32.mrf.mxu0
        %v962 = vadd.f32 %v915, %v961
        %963 = vdwg.mxu0
        %v964 = vld [vmem:[#allocation2] sm:$0xf]
        %v965 = vld [vmem:[#allocation2 + $0x4] sm:$0xf]
        %v966 = vld [vmem:[#allocation2 + $0x8] sm:$0xf]
        %v967 = vld [vmem:[#allocation2 + $0xc] sm:$0xf]
        %v968 = vld [vmem:[#allocation2 + $0x10] sm:$0xf]
        %v969 = vld [vmem:[#allocation2 + $0x14] sm:$0xf]
        %v970 = vld [vmem:[%s11] sm:$0xf]
        %v971 = vld [vmem:[%s11 + $0x4] sm:$0xf]
        %v972 = vld [vmem:[%s11 + $0x8] sm:$0x1]
        %v979 = vunpack.c.l.b16 %v964
        %v980 = vunpack.c.l.b16 %v965
        %v981 = vunpack.c.l.b16 %v966
        %v982 = vunpack.c.l.b16 %v967
        %v983 = vunpack.c.l.b16 %v968
        %v984 = vunpack.c.l.b16 %v969
        %v985 = vpack.c.b16 %v980, %v979
        %v986 = vpack.c.b16 %v982, %v981
        %v987 = vpack.c.b16 %v984, %v983
        %v991 = vunpack.c.l.b16 %v970
        %v992 = vunpack.c.l.b16 %v971
        %v993 = vunpack.c.l.b16 %v972
        %v994 = vpack.c.b16 %v992, %v991
        %v995 = vpack.c.b16 %v993, %v993
        %vm997 = vcmask 138240
        %v999 = vsel %vm997, %v985, 0
        %v1002 = vsel %vm997, %v986, 0
        %v1005 = vsel %vm997, %v987, 0
        %vm1007 = vcmask 1040384
        %v1008 = vsel 0, 4294967295, 65535
        %v1009 = vsel %vm1007, %v1008, 0
        %v1011 = vand.u32 %v995, %v1009
        %1013 = vmatpush.bf16.msra.mxu0 0
        %1014 = vmatpush.bf16.msra.mxu0 0
        %1015 = vmatpush.bf16.msra.mxu0 0
        %1016 = vmatpush.bf16.msra.mxu0 0
        %1017 = vmatpush.bf16.msra.mxu0 0
        %1018 = vmatpush.bf16.msra.mxu0 0
        %1019 = vmatpush.bf16.msra.mxu0 %v1011
        %1020 = vmatpush.bf16.msra.mxu0 %v994
        %1021 = vmatmul.bf16.gmra.mxu0 %v999
        %v1022 = vpop.f32.mrf.mxu0
        %v1023 = vadd.f32 0.0, %v1022
        %v1024 = vpop.f32.mrf.mxu0
        %v1025 = vadd.f32 0.0, %v1024
        %1026 = vmatmul.bf16.gmra.mxu0 %v1002
        %v1027 = vpop.f32.mrf.mxu0
        %v1028 = vadd.f32 0.0, %v1027
        %v1029 = vpop.f32.mrf.mxu0
        %v1030 = vadd.f32 0.0, %v1029
        %1031 = vmatmul.bf16.gmra.mxu0 %v1005
        %v1032 = vpop.f32.mrf.mxu0
        %v1033 = vadd.f32 0.0, %v1032
        %v1034 = vpop.f32.mrf.mxu0
        %v1035 = vadd.f32 0.0, %v1034
        %1036 = vdwg.mxu0
        %v1037 = vadd.f32 %v950, %v1023
        %v1038 = vadd.f32 %v952, %v1025
        %v1039 = vadd.f32 %v955, %v1028
        %v1040 = vadd.f32 %v957, %v1030
        %v1041 = vadd.f32 %v960, %v1033
        %v1042 = vadd.f32 %v962, %v1035
        %v1043 = vld [vmem:[%s12] sm:$0x1]
        %v1045 = vperm.slane %v1043, 0
        %v1047 = vadd.f32 %v1037, %v1045
        %v1048 = vadd.f32 %v1038, %v1045
        %v1049 = vadd.f32 %v1039, %v1045
        %v1050 = vadd.f32 %v1040, %v1045
        %v1051 = vadd.f32 %v1041, %v1045
        %v1052 = vadd.f32 %v1042, %v1045
        %vm1053 = vcmp.gt.f32.partialorder %v1047, 0.0
        %vm1054 = vcmp.gt.f32.partialorder %v1048, 0.0
        %vm1055 = vcmp.gt.f32.partialorder %v1049, 0.0
        %vm1056 = vcmp.gt.f32.partialorder %v1050, 0.0
        %vm1057 = vcmp.gt.f32.partialorder %v1051, 0.0
        %vm1058 = vcmp.gt.f32.partialorder %v1052, 0.0
        %v1059 = vmul.f32 %v1047, 0.01
        %v1060 = vmul.f32 %v1048, 0.01
        %v1061 = vmul.f32 %v1049, 0.01
        %v1062 = vmul.f32 %v1050, 0.01
        %v1063 = vmul.f32 %v1051, 0.01
        %v1064 = vmul.f32 %v1052, 0.01
        %v1065 = vsel %vm1053, %v1047, %v1059
        %v1066 = vsel %vm1054, %v1048, %v1060
        %v1067 = vsel %vm1055, %v1049, %v1061
        %v1068 = vsel %vm1056, %v1050, %v1062
        %v1069 = vsel %vm1057, %v1051, %v1063
        %v1070 = vsel %vm1058, %v1052, %v1064
        %v1071 = vmul.f32 %v1065, %v1065
        %v1072 = vmul.f32 %v1066, %v1066
        %v1073 = vmul.f32 %v1067, %v1067
        %v1074 = vmul.f32 %v1068, %v1068
        %v1075 = vmul.f32 %v1069, %v1069
        %v1076 = vmul.f32 %v1070, %v1070
        %vm1077 = vcmask 261120
        %v1078 = vsel %vm1077, %v1071, 0.0
        %v1079 = vsel %vm1077, %v1072, 0.0
        %v1080 = vadd.f32 %v1078, %v1079
        %v1081 = vsel %vm1077, %v1073, 0.0
        %v1082 = vadd.f32 %v1080, %v1081
        %v1083 = vsel %vm1077, %v1074, 0.0
        %v1084 = vadd.f32 %v1082, %v1083
        %v1085 = vsel %vm1077, %v1075, 0.0
        %v1086 = vadd.f32 %v1084, %v1085
        %v1087 = vsel %vm1077, %v1076, 0.0
        %v1088 = vadd.f32 %v1086, %v1087
        %v1089 = vrot.slane %v1088, 4
        %v1090 = vadd.f32 %v1088, %v1089
        %v1091 = vrot.slane %v1090, 2
        %v1092 = vadd.f32 %v1090, %v1091
        %v1093 = vrot.slane %v1092, 1
        %v1094 = vadd.f32 %v1092, %v1093
        %v1095 = vsel %vm1077, %v1094, 0.0
        %1096 = vadd.xlane.f32.xlu0 %v1095
        %v1097 = vpop.xlane.xlu0 %1096
        %v1098 = vadd.f32 %v1097, 1.0
        %v1099 = vrsqrt.pop %v1098
        %v1100 = vmul.f32 %v1099, %v1098
        %v1101 = vmul.f32 %v1100, %v1099
        %v1102 = vmul.f32 0.5, %v1101
        %v1103 = vsub.f32 1.5, %v1102
        %v1104 = vmul.f32 %v1099, %v1103
        %v1105 = vmul.f32 %v1098, %v1104
        %vm1106 = vcmp.eq.f32.partialorder %v1098, inf
        %v1107 = vsel %vm1106, %v1098, %v1105
        %vm1108 = vcmp.eq.f32.partialorder %v1098, 0.0
        %v1109 = vand.u32 %v1098, 2147483648
        %v1110 = vsel %vm1108, %v1109, %v1107
        %v1111 = vld [vmem:[%s13] sm:$0xff]
        %v1112 = vld [vmem:[%s13 + $0x8] sm:$0xff]
        %v1113 = vld [vmem:[%s13 + $0x10] sm:$0xff]
        %v1114 = vld [vmem:[%s13 + $0x18] sm:$0xff]
        %v1115 = vld [vmem:[%s13 + $0x20] sm:$0xff]
        %v1116 = vld [vmem:[%s13 + $0x28] sm:$0xff]
        %v1117 = vmul.f32 %v1065, %v1110
        %v1118 = vmul.f32 %v1066, %v1110
        %v1119 = vmul.f32 %v1067, %v1110
        %v1120 = vmul.f32 %v1068, %v1110
        %v1121 = vmul.f32 %v1069, %v1110
        %v1122 = vmul.f32 %v1070, %v1110
        %v1123 = vadd.f32 %v1111, %v1117
        %v1124 = vadd.f32 %v1112, %v1118
        %v1125 = vadd.f32 %v1113, %v1119
        %v1126 = vadd.f32 %v1114, %v1120
        %v1127 = vadd.f32 %v1115, %v1121
        %v1128 = vadd.f32 %v1116, %v1122
        %1129 = vst.msk [vmem:[%s13] sm:$0xff] %vm1077, %v1123
        %1130 = vst.msk [vmem:[%s13 + $0x8] sm:$0xff] %vm1077, %v1124
        %1131 = vst.msk [vmem:[%s13 + $0x10] sm:$0xff] %vm1077, %v1125
        %1132 = vst.msk [vmem:[%s13 + $0x18] sm:$0xff] %vm1077, %v1126
        %1133 = vst.msk [vmem:[%s13 + $0x20] sm:$0xff] %vm1077, %v1127
        %1134 = vst.msk [vmem:[%s13 + $0x28] sm:$0xff] %vm1077, %v1128
        %v1135 = vld [vmem:[#allocation3] sm:$0x1]
        %v1136 = vadd.f32 %v1135, %v1110
        %vm1137 = vcmask 0
        %1138 = vst.msk [vmem:[#allocation3] sm:$0x1] %vm1137, %v1136
        %p1139 = scmp.eq.s32.totalorder %s26, 1
        // Predicated region
        $region127: #{tpu_custom_call.1} parent=105 // pred_check
          %p1140 = pneg %p1139
        $region128: #{tpu_custom_call.1} parent=105 // pred_check_branch
          %1142 = sbr.rel (%p1140) target = $region130
        $region129: #{tpu_custom_call.1} parent=105 // pred_region
          %v1143 = vld [vmem:[%s13] sm:$0xff]
          %v1144 = vld [vmem:[%s13 + $0x8] sm:$0xff]
          %v1145 = vld [vmem:[%s13 + $0x10] sm:$0xff]
          %v1146 = vld [vmem:[%s13 + $0x18] sm:$0xff]
          %v1147 = vld [vmem:[%s13 + $0x20] sm:$0xff]
          %v1148 = vld [vmem:[%s13 + $0x28] sm:$0xff]
          %v1149 = vld [vmem:[#allocation3] sm:$0x1]
          %v1151 = vperm.slane %v1149, 0
          %1152 = vset.pattern.permute.xlu0 0
          %1153 = vperm.xlu0 %1152, %v1151
          %v1154 = vpop.permute.xlu0 %1153
          %v1156 = vrcp.pop %v1154
          %v1157 = vmul.f32 %v1154, %v1156
          %v1158 = vsub.f32 1.0, %v1157
          %v1159 = vmul.f32 %v1156, %v1158
          %v1160 = vadd.f32 %v1156, %v1159
          %vm1161 = vweird.f32 %v1154
          %vm1162 = vweird.f32 %v1156
          %vm1163 = vmor %vm1161, %vm1162
          %v1164 = vsel %vm1163, %v1156, %v1160
          %v1165 = vand.u32 2147483647, %v1154
          %vm1166 = vcmp.eq.f32.partialorder %v1165, 8.507059e+37
          %v1167 = vand.u32 %v1154, 2147483648
          %v1168 = vor.u32 1.1754944e-38, %v1167
          %v1169 = vsel %vm1166, %v1168, %v1164
          %v1170 = vmul.f32 %v1143, %v1169
          %v1171 = vmul.f32 %v1144, %v1169
          %v1172 = vmul.f32 %v1145, %v1169
          %v1173 = vmul.f32 %v1146, %v1169
          %v1174 = vmul.f32 %v1147, %v1169
          %v1175 = vmul.f32 %v1148, %v1169
          %1176 = vst.msk [vmem:[%s13] sm:$0xff] %vm1077, %v1170
          %1177 = vst.msk [vmem:[%s13 + $0x8] sm:$0xff] %vm1077, %v1171
          %1178 = vst.msk [vmem:[%s13 + $0x10] sm:$0xff] %vm1077, %v1172
          %1179 = vst.msk [vmem:[%s13 + $0x18] sm:$0xff] %vm1077, %v1173
          %1180 = vst.msk [vmem:[%s13 + $0x20] sm:$0xff] %vm1077, %v1174
          %1181 = vst.msk [vmem:[%s13 + $0x28] sm:$0xff] %vm1077, %v1175
        $region130: #{tpu_custom_call.1} parent=105 // pred_fallthru
          _
        // Predicated region
        $region131: #{tpu_custom_call.1} parent=105 // pred_check
          %p1182 = pneg %p322
        $region132: #{tpu_custom_call.1} parent=105 // pred_check_branch
          %1184 = sbr.rel (%p1182) target = $region134
        $region133: #{tpu_custom_call.1} parent=105 // pred_region
          _
        $region134: #{tpu_custom_call.1} parent=105 // pred_fallthru
          _
        // Predicated region
        $region135: #{tpu_custom_call.1} parent=105 // pred_check
          %p1185 = pneg %p322
        $region136: #{tpu_custom_call.1} parent=105 // pred_check_branch
          %1187 = sbr.rel (%p1185) target = $region138
        $region137: #{tpu_custom_call.1} parent=105 // pred_region
          _
        $region138: #{tpu_custom_call.1} parent=105 // pred_fallthru
          _
      $region106: #{tpu_custom_call.1} parent=5 // pred_fallthru
        _
      %p1188 = scmp.le.s32.totalorder 2, %s21
      // Predicated region
      $region139: #{tpu_custom_call.1} parent=5 // pred_check
        %p1189 = pneg %p1188
      $region140: #{tpu_custom_call.1} parent=5 // pred_check_branch
        %1191 = sbr.rel (%p1189) target = $region142
      $region141: #{tpu_custom_call.1} parent=5 // pred_region
        %s1192 = ssub.s32 %s21, 2
      $region142: #{tpu_custom_call.1} parent=5 // pred_fallthru
        _
    $region6: #{tpu_custom_call.1} parent=1 // loop_footer
      %s25 = sadd.s32 1, %s21
    $region7: #{tpu_custom_call.1} parent=1 // loop_footer_branch
      %20 = sbr.rel target = $region3
    $region8: #{tpu_custom_call.1} parent=1 // loop_exit
      _
    %1193 = vsyncpa [#allocation6], 1
    %s1194 = scalar_lea.sflag [#allocation6], 1
    %1195 = vsyncpa %s1194, 1
    %1196 = vsyncpa [#allocation8], 1

</llo_original>
